<compile_context>
chip_gen: v5e
topology: v5e:2x2
jax: 0.10.0
libtpu: 0.0.40
codegen_flags: <defaults>
</compile_context>

<pallas_src>
import functools

import jax
import jax.numpy as jnp
import numpy as np
from jax.experimental import pallas as pl
from jax.experimental.pallas import tpu as pltpu


def _round_up(x, m):
    return (x + m - 1) // m * m


# ----------------------------------------------------------------------------
# Pallas kernel: one (bt batch) x (qt query) tile per grid step.
#   coef_ref : [bt, 128] f32 VMEM — cols 0..8  = T^{-1} (row-major)
#                                   cols 9..17 = T^{-1} * (1000/t_scale)/img_scale
#   quat_ref : [4, bt, qt]  — quaternion (w,x,y,z); batch on sublanes, Q on lanes
#   trans_ref: [3, bt, qt]  — raw predicted translations
#   rot_out  : [9, bt, qt]  — rotation matrices, row-major over the leading axis
#   t_out    : [3, bt, qt]  — transformed translations
# ----------------------------------------------------------------------------
def _post_process_pose_kernel(coef_ref, quat_ref, trans_ref, rot_out_ref, t_out_ref):
    # TODO(synk): reference source does not ship `transform_poses`/`quat2mat`;
    # standard (w,x,y,z) quat2mat + inverse-affine (T^{-1} @ [R|t], t / scale)
    # are used and the intrinsics are intentionally not consumed.
    f32 = jnp.float32

    w = quat_ref[0].astype(f32)                       # [bt, qt] dense vregs
    x = quat_ref[1].astype(f32)
    y = quat_ref[2].astype(f32)
    z = quat_ref[3].astype(f32)

    # rsqrt goes to the EUP slot (effectively free next to the VALU work).
    inv_norm = jax.lax.rsqrt(w * w + x * x + y * y + z * z + 1e-24)
    w = w * inv_norm
    x = x * inv_norm
    y = y * inv_norm
    z = z * inv_norm

    # quat2mat with precomputed doubles: each matrix entry is one add/sub.
    x2 = x + x
    y2 = y + y
    z2 = z + z
    xx2, yy2, zz2 = x * x2, y * y2, z * z2
    wx2, wy2, wz2 = w * x2, w * y2, w * z2
    xy2, xz2, yz2 = x * y2, x * z2, y * z2

    r = [
        [1.0 - (yy2 + zz2), xy2 - wz2,         xz2 + wy2],
        [xy2 + wz2,         1.0 - (xx2 + zz2), yz2 - wx2],
        [xz2 - wy2,         yz2 + wx2,         1.0 - (xx2 + yy2)],
    ]

    tc = [trans_ref[i].astype(f32) for i in range(3)]   # 3 x [bt, qt]

    coef = coef_ref[...]                                 # [bt, 128]

    def c(idx):                                          # [bt, 1] column, lane-broadcast
        return coef[:, idx:idx + 1]

    Trot = [[c(3 * i + j) for j in range(3)] for i in range(3)]
    Ttr = [[c(9 + 3 * i + j) for j in range(3)] for i in range(3)]

    # Kept on the VPU on purpose: a 3x3 contraction would waste the MXU.
    for i in range(3):
        for k in range(3):
            rot_out_ref[3 * i + k] = (
                Trot[i][0] * r[0][k]
                + Trot[i][1] * r[1][k]
                + Trot[i][2] * r[2][k]).astype(rot_out_ref.dtype)
        t_out_ref[i] = (
            Ttr[i][0] * tc[0] + Ttr[i][1] * tc[1] + Ttr[i][2] * tc[2]
        ).astype(t_out_ref.dtype)


# ----------------------------------------------------------------------------
# Wrapper (the "module") — jitted so the output slice/transpose fuses with it.
# ----------------------------------------------------------------------------
@functools.partial(
    jax.jit,
    static_argnames=("rotation_representation", "translation_scale",
                     "batch_tile", "q_tile"))
def post_process_pose(pred_rotations, pred_translations, target_intrinsics,
                      target_transforms, target_scales, *,
                      rotation_representation="quaternion",
                      translation_scale=1.0,
                      batch_tile=64,
                      q_tile=512):
    """Returns stacked (rotations [B,Q,3,3], translations [B,Q,3])."""
    if rotation_representation != "quaternion":
        # TODO(synk): axis_angle / rotation_6d / raw-matrix branches not implemented.
        raise NotImplementedError("only the 'quaternion' branch is implemented")
    del target_intrinsics  # carried for API parity with the nn.Module; unused here.

    B, Q, _ = pred_rotations.shape

    # Batch tile (sublane axis): multiple of 8.
    bt = min(int(batch_tile), _round_up(B, 8))
    bt = max(8, _round_up(bt, 8))
    Bp = _round_up(B, bt)

    # Query tile (lane axis): multiple of 128 that divides the padded extent.
    Qp = _round_up(max(Q, 128), 128)
    qt = max(128, min(_round_up(int(q_tile), 128), Qp))
    while Qp % qt:
        qt -= 128

    tfac = 1000.0 / float(translation_scale)

    # inv=True in transform_poses -> invert the per-image transform (glue).
    tinv = jnp.linalg.inv(target_transforms.astype(jnp.float32))        # [B,3,3]
    coef = jnp.concatenate(
        [tinv.reshape(B, 9),
         (tinv * (tfac / target_scales.astype(jnp.float32))[:, None, None]
          ).reshape(B, 9)],
        axis=-1)                                                         # [B,18]
    coef = jnp.pad(coef, ((0, Bp - B), (0, 128 - 18)))                   # [Bp,128]

    # Batch-on-sublane / Q-on-lane layout (kernel upcasts, so bf16 inputs OK).
    quat_t = jnp.pad(jnp.transpose(pred_rotations, (2, 0, 1)),
                     ((0, 0), (0, Bp - B), (0, Qp - Q)))                 # [4,Bp,Qp]
    trans_t = jnp.pad(jnp.transpose(pred_translations, (2, 0, 1)),
                      ((0, 0), (0, Bp - B), (0, Qp - Q)))                # [3,Bp,Qp]

    # Double-buffered footprint + slack, capped below v7x's 64 MiB physical VMEM.
    block_bytes = (4 + 3 + 9 + 3) * bt * qt * 4 + bt * 128 * 4
    vmem_limit = int(min(max(3 * block_bytes, 16 << 20), 48 << 20))

    rot_f, t_f = pl.pallas_call(
        _post_process_pose_kernel,
        out_shape=(jax.ShapeDtypeStruct((9, Bp, Qp), jnp.float32),
                   jax.ShapeDtypeStruct((3, Bp, Qp), jnp.float32)),
        grid_spec=pltpu.PrefetchScalarGridSpec(
            num_scalar_prefetch=0,
            grid=(Bp // bt, Qp // qt),
            in_specs=[
                pl.BlockSpec((bt, 128), lambda b, q: (b, 0)),     # coefficients
                pl.BlockSpec((4, bt, qt), lambda b, q: (0, b, q)),  # quats
                pl.BlockSpec((3, bt, qt), lambda b, q: (0, b, q)),  # translations
            ],
            out_specs=[
                pl.BlockSpec((9, bt, qt), lambda b, q: (0, b, q)),
                pl.BlockSpec((3, bt, qt), lambda b, q: (0, b, q)),
            ]),
        compiler_params=pltpu.CompilerParams(
            dimension_semantics=("parallel", "parallel"),  # lets v7x use both TCs
            vmem_limit_bytes=vmem_limit),
    )(coef, quat_t, trans_t)

    rotations = jnp.transpose(rot_f[:, :B, :Q], (1, 2, 0)).reshape(B, Q, 3, 3)
    translations = jnp.transpose(t_f[:, :B, :Q], (1, 2, 0))
    return rotations, translations


# ----------------------------------------------------------------------------
# Pure-JAX reference (same math) for a sanity check.
# ----------------------------------------------------------------------------
def _reference(pred_rot, pred_trans, tfm, scales, translation_scale):
    B, Q, _ = pred_rot.shape
    q = pred_rot.astype(jnp.float32)
    sumsq = jnp.sum(q * q, axis=-1, keepdims=True)
    qn = q * jax.lax.rsqrt(sumsq + 1e-24)
    w, x, y, z = qn[..., 0], qn[..., 1], qn[..., 2], qn[..., 3]
    R = jnp.stack(
        [1 - 2 * (y * y + z * z), 2 * (x * y - w * z), 2 * (x * z + w * y),
         2 * (x * y + w * z), 1 - 2 * (x * x + z * z), 2 * (y * z - w * x),
         2 * (x * z - w * y), 2 * (y * z + w * x), 1 - 2 * (x * x + y * y)],
        axis=-1).reshape(B, Q, 3, 3)
    t = pred_trans.astype(jnp.float32) * (1000.0 / translation_scale)
    Tinv = jnp.linalg.inv(tfm.astype(jnp.float32))
    Rout = jnp.einsum("bij,bqjk->bqik", Tinv, R)
    tout = jnp.einsum("bij,bqj->bqi", Tinv, t) / scales[:, None, None]
    return Rout, tout


if __name__ == "__main__":
    B, Q = 2, 8
    translation_scale = 2.0

    key = jax.random.PRNGKey(0)
    k1, k2, k3, k4, k5 = jax.random.split(key, 5)

    pred_rotations = jax.random.normal(k1, (B, Q, 4), dtype=jnp.float32)
    pred_translations = jax.random.normal(k2, (B, Q, 3), dtype=jnp.float32)
    target_intrinsics = jax.random.normal(k3, (B, 3, 3), dtype=jnp.float32)
    # Invertible, well-conditioned transforms.
    target_transforms = (jnp.eye(3, dtype=jnp.float32)[None]
                         + 0.1 * jax.random.normal(k4, (B, 3, 3), dtype=jnp.float32))
    target_scales = jax.random.uniform(k5, (B,), minval=0.5, maxval=2.0,
                                       dtype=jnp.float32)

    rotations, translations = post_process_pose(
        pred_rotations, pred_translations, target_intrinsics,
        target_transforms, target_scales,
        rotation_representation="quaternion",
        translation_scale=translation_scale)
    jax.block_until_ready((rotations, translations))

    # Single device->host transfer, then cheap host-side per-image packing
    # (mirrors the per-image dict outputs of the nn.Module).
    rot_np = np.asarray(rotations)
    t_np = np.asarray(translations)
    results = [{"rotations": rot_np[b], "translations": t_np[b]} for b in range(B)]

    # Sanity check against a plain-JAX reference.
    R_ref, t_ref = _reference(pred_rotations, pred_translations,
                              target_transforms, target_scales,
                              translation_scale)
    np.testing.assert_allclose(rot_np, np.asarray(R_ref), rtol=1e-4, atol=1e-4)
    np.testing.assert_allclose(t_np, np.asarray(t_ref), rtol=1e-4, atol=1e-4)
    assert len(results) == B

    print("KERNEL_OK")
</pallas_src>

<mosaic_0001>
module attributes {stable_mosaic.version = 11 : i64} {
  func.func @_post_process_pose_kernel(%arg0: i32, %arg1: i32, %arg2: memref<8x128xf32, #tpu.memory_space<vmem>>, %arg3: memref<4x8x128xf32, #tpu.memory_space<vmem>>, %arg4: memref<3x8x128xf32, #tpu.memory_space<vmem>>, %arg5: memref<9x8x128xf32, #tpu.memory_space<vmem>>, %arg6: memref<3x8x128xf32, #tpu.memory_space<vmem>>) attributes {dimension_semantics = [#tpu.dimension_semantics<parallel>, #tpu.dimension_semantics<parallel>], iteration_bounds = array<i64: 1, 1>, scalar_prefetch = 0 : i64, scratch_operands = 0 : i64, tpu.core_type = #tpu.core_type<tc>, window_params = [{transform_indices = @transform_0, window_bounds = array<i64: 8, 128>}, {transform_indices = @transform_1, window_bounds = array<i64: 4, 8, 128>}, {transform_indices = @transform_2, window_bounds = array<i64: 3, 8, 128>}, {transform_indices = @transform_3, window_bounds = array<i64: 9, 8, 128>}, {transform_indices = @transform_4, window_bounds = array<i64: 3, 8, 128>}]} {
    %c0 = arith.constant 0 : index
    %c0_0 = arith.constant 0 : index
    %c0_1 = arith.constant 0 : index
    %0 = vector.load %arg3[%c0, %c0_0, %c0_1] : memref<4x8x128xf32, #tpu.memory_space<vmem>>, vector<1x8x128xf32>
    %1 = vector.shape_cast %0 : vector<1x8x128xf32> to vector<8x128xf32>
    %c1 = arith.constant 1 : index
    %c0_2 = arith.constant 0 : index
    %c0_3 = arith.constant 0 : index
    %2 = vector.load %arg3[%c1, %c0_2, %c0_3] : memref<4x8x128xf32, #tpu.memory_space<vmem>>, vector<1x8x128xf32>
    %3 = vector.shape_cast %2 : vector<1x8x128xf32> to vector<8x128xf32>
    %c2 = arith.constant 2 : index
    %c0_4 = arith.constant 0 : index
    %c0_5 = arith.constant 0 : index
    %4 = vector.load %arg3[%c2, %c0_4, %c0_5] : memref<4x8x128xf32, #tpu.memory_space<vmem>>, vector<1x8x128xf32>
    %5 = vector.shape_cast %4 : vector<1x8x128xf32> to vector<8x128xf32>
    %c3 = arith.constant 3 : index
    %c0_6 = arith.constant 0 : index
    %c0_7 = arith.constant 0 : index
    %6 = vector.load %arg3[%c3, %c0_6, %c0_7] : memref<4x8x128xf32, #tpu.memory_space<vmem>>, vector<1x8x128xf32>
    %7 = vector.shape_cast %6 : vector<1x8x128xf32> to vector<8x128xf32>
    %8 = arith.mulf %1, %1 : vector<8x128xf32>
    %9 = arith.mulf %3, %3 : vector<8x128xf32>
    %10 = arith.addf %8, %9 : vector<8x128xf32>
    %11 = arith.mulf %5, %5 : vector<8x128xf32>
    %12 = arith.addf %10, %11 : vector<8x128xf32>
    %13 = arith.mulf %7, %7 : vector<8x128xf32>
    %14 = arith.addf %12, %13 : vector<8x128xf32>
    %cst = arith.constant 1.000000e-24 : f32
    %15 = vector.broadcast %cst : f32 to vector<8x128xf32>
    %16 = arith.addf %14, %15 : vector<8x128xf32>
    %17 = math.rsqrt %16 : vector<8x128xf32>
    %18 = arith.mulf %1, %17 : vector<8x128xf32>
    %19 = arith.mulf %3, %17 : vector<8x128xf32>
    %20 = arith.mulf %5, %17 : vector<8x128xf32>
    %21 = arith.mulf %7, %17 : vector<8x128xf32>
    %22 = arith.addf %19, %19 : vector<8x128xf32>
    %23 = arith.addf %20, %20 : vector<8x128xf32>
    %24 = arith.addf %21, %21 : vector<8x128xf32>
    %25 = arith.mulf %19, %22 : vector<8x128xf32>
    %26 = arith.mulf %20, %23 : vector<8x128xf32>
    %27 = arith.mulf %21, %24 : vector<8x128xf32>
    %28 = arith.mulf %18, %22 : vector<8x128xf32>
    %29 = arith.mulf %18, %23 : vector<8x128xf32>
    %30 = arith.mulf %18, %24 : vector<8x128xf32>
    %31 = arith.mulf %19, %23 : vector<8x128xf32>
    %32 = arith.mulf %19, %24 : vector<8x128xf32>
    %33 = arith.mulf %20, %24 : vector<8x128xf32>
    %34 = arith.addf %26, %27 : vector<8x128xf32>
    %cst_8 = arith.constant 1.000000e+00 : f32
    %35 = vector.broadcast %cst_8 : f32 to vector<8x128xf32>
    %36 = arith.subf %35, %34 : vector<8x128xf32>
    %37 = arith.subf %31, %30 : vector<8x128xf32>
    %38 = arith.addf %32, %29 : vector<8x128xf32>
    %39 = arith.addf %31, %30 : vector<8x128xf32>
    %40 = arith.addf %25, %27 : vector<8x128xf32>
    %cst_9 = arith.constant 1.000000e+00 : f32
    %41 = vector.broadcast %cst_9 : f32 to vector<8x128xf32>
    %42 = arith.subf %41, %40 : vector<8x128xf32>
    %43 = arith.subf %33, %28 : vector<8x128xf32>
    %44 = arith.subf %32, %29 : vector<8x128xf32>
    %45 = arith.addf %33, %28 : vector<8x128xf32>
    %46 = arith.addf %25, %26 : vector<8x128xf32>
    %cst_10 = arith.constant 1.000000e+00 : f32
    %47 = vector.broadcast %cst_10 : f32 to vector<8x128xf32>
    %48 = arith.subf %47, %46 : vector<8x128xf32>
    %c0_11 = arith.constant 0 : index
    %c0_12 = arith.constant 0 : index
    %c0_13 = arith.constant 0 : index
    %49 = vector.load %arg4[%c0_11, %c0_12, %c0_13] : memref<3x8x128xf32, #tpu.memory_space<vmem>>, vector<1x8x128xf32>
    %50 = vector.shape_cast %49 : vector<1x8x128xf32> to vector<8x128xf32>
    %c1_14 = arith.constant 1 : index
    %c0_15 = arith.constant 0 : index
    %c0_16 = arith.constant 0 : index
    %51 = vector.load %arg4[%c1_14, %c0_15, %c0_16] : memref<3x8x128xf32, #tpu.memory_space<vmem>>, vector<1x8x128xf32>
    %52 = vector.shape_cast %51 : vector<1x8x128xf32> to vector<8x128xf32>
    %c2_17 = arith.constant 2 : index
    %c0_18 = arith.constant 0 : index
    %c0_19 = arith.constant 0 : index
    %53 = vector.load %arg4[%c2_17, %c0_18, %c0_19] : memref<3x8x128xf32, #tpu.memory_space<vmem>>, vector<1x8x128xf32>
    %54 = vector.shape_cast %53 : vector<1x8x128xf32> to vector<8x128xf32>
    %c0_20 = arith.constant 0 : index
    %c0_21 = arith.constant 0 : index
    %55 = vector.load %arg2[%c0_20, %c0_21] : memref<8x128xf32, #tpu.memory_space<vmem>>, vector<8x128xf32>
    %56 = vector.extract_strided_slice %55 {offsets = [0, 0], sizes = [8, 1], strides = [1, 1]} : vector<8x128xf32> to vector<8x1xf32>
    %57 = vector.extract_strided_slice %55 {offsets = [0, 1], sizes = [8, 1], strides = [1, 1]} : vector<8x128xf32> to vector<8x1xf32>
    %58 = vector.extract_strided_slice %55 {offsets = [0, 2], sizes = [8, 1], strides = [1, 1]} : vector<8x128xf32> to vector<8x1xf32>
    %59 = vector.extract_strided_slice %55 {offsets = [0, 3], sizes = [8, 1], strides = [1, 1]} : vector<8x128xf32> to vector<8x1xf32>
    %60 = vector.extract_strided_slice %55 {offsets = [0, 4], sizes = [8, 1], strides = [1, 1]} : vector<8x128xf32> to vector<8x1xf32>
    %61 = vector.extract_strided_slice %55 {offsets = [0, 5], sizes = [8, 1], strides = [1, 1]} : vector<8x128xf32> to vector<8x1xf32>
    %62 = vector.extract_strided_slice %55 {offsets = [0, 6], sizes = [8, 1], strides = [1, 1]} : vector<8x128xf32> to vector<8x1xf32>
    %63 = vector.extract_strided_slice %55 {offsets = [0, 7], sizes = [8, 1], strides = [1, 1]} : vector<8x128xf32> to vector<8x1xf32>
    %64 = vector.extract_strided_slice %55 {offsets = [0, 8], sizes = [8, 1], strides = [1, 1]} : vector<8x128xf32> to vector<8x1xf32>
    %65 = vector.extract_strided_slice %55 {offsets = [0, 9], sizes = [8, 1], strides = [1, 1]} : vector<8x128xf32> to vector<8x1xf32>
    %66 = vector.extract_strided_slice %55 {offsets = [0, 10], sizes = [8, 1], strides = [1, 1]} : vector<8x128xf32> to vector<8x1xf32>
    %67 = vector.extract_strided_slice %55 {offsets = [0, 11], sizes = [8, 1], strides = [1, 1]} : vector<8x128xf32> to vector<8x1xf32>
    %68 = vector.extract_strided_slice %55 {offsets = [0, 12], sizes = [8, 1], strides = [1, 1]} : vector<8x128xf32> to vector<8x1xf32>
    %69 = vector.extract_strided_slice %55 {offsets = [0, 13], sizes = [8, 1], strides = [1, 1]} : vector<8x128xf32> to vector<8x1xf32>
    %70 = vector.extract_strided_slice %55 {offsets = [0, 14], sizes = [8, 1], strides = [1, 1]} : vector<8x128xf32> to vector<8x1xf32>
    %71 = vector.extract_strided_slice %55 {offsets = [0, 15], sizes = [8, 1], strides = [1, 1]} : vector<8x128xf32> to vector<8x1xf32>
    %72 = vector.extract_strided_slice %55 {offsets = [0, 16], sizes = [8, 1], strides = [1, 1]} : vector<8x128xf32> to vector<8x1xf32>
    %73 = vector.extract_strided_slice %55 {offsets = [0, 17], sizes = [8, 1], strides = [1, 1]} : vector<8x128xf32> to vector<8x1xf32>
    %74 = vector.broadcast %56 : vector<8x1xf32> to vector<8x128xf32>
    %75 = arith.mulf %74, %36 : vector<8x128xf32>
    %76 = vector.broadcast %57 : vector<8x1xf32> to vector<8x128xf32>
    %77 = arith.mulf %76, %39 : vector<8x128xf32>
    %78 = arith.addf %75, %77 : vector<8x128xf32>
    %79 = vector.broadcast %58 : vector<8x1xf32> to vector<8x128xf32>
    %80 = arith.mulf %79, %44 : vector<8x128xf32>
    %81 = arith.addf %78, %80 : vector<8x128xf32>
    %c0_22 = arith.constant 0 : index
    %c0_23 = arith.constant 0 : index
    %c0_24 = arith.constant 0 : index
    %82 = vector.load %arg5[%c0_22, %c0_23, %c0_24] : memref<9x8x128xf32, #tpu.memory_space<vmem>>, vector<1x8x128xf32>
    %83 = vector.shape_cast %82 : vector<1x8x128xf32> to vector<8x128xf32>
    %84 = vector.shape_cast %81 : vector<8x128xf32> to vector<1x8x128xf32>
    tpu.vector_store %arg5[%c0_22, %c0_23, %c0_24], %84 {strides = array<i32>} : memref<9x8x128xf32, #tpu.memory_space<vmem>>, vector<1x8x128xf32>,
    %85 = vector.broadcast %56 : vector<8x1xf32> to vector<8x128xf32>
    %86 = arith.mulf %85, %37 : vector<8x128xf32>
    %87 = vector.broadcast %57 : vector<8x1xf32> to vector<8x128xf32>
    %88 = arith.mulf %87, %42 : vector<8x128xf32>
    %89 = arith.addf %86, %88 : vector<8x128xf32>
    %90 = vector.broadcast %58 : vector<8x1xf32> to vector<8x128xf32>
    %91 = arith.mulf %90, %45 : vector<8x128xf32>
    %92 = arith.addf %89, %91 : vector<8x128xf32>
    %c1_25 = arith.constant 1 : index
    %c0_26 = arith.constant 0 : index
    %c0_27 = arith.constant 0 : index
    %93 = vector.load %arg5[%c1_25, %c0_26, %c0_27] : memref<9x8x128xf32, #tpu.memory_space<vmem>>, vector<1x8x128xf32>
    %94 = vector.shape_cast %93 : vector<1x8x128xf32> to vector<8x128xf32>
    %95 = vector.shape_cast %92 : vector<8x128xf32> to vector<1x8x128xf32>
    tpu.vector_store %arg5[%c1_25, %c0_26, %c0_27], %95 {strides = array<i32>} : memref<9x8x128xf32, #tpu.memory_space<vmem>>, vector<1x8x128xf32>,
    %96 = vector.broadcast %56 : vector<8x1xf32> to vector<8x128xf32>
    %97 = arith.mulf %96, %38 : vector<8x128xf32>
    %98 = vector.broadcast %57 : vector<8x1xf32> to vector<8x128xf32>
    %99 = arith.mulf %98, %43 : vector<8x128xf32>
    %100 = arith.addf %97, %99 : vector<8x128xf32>
    %101 = vector.broadcast %58 : vector<8x1xf32> to vector<8x128xf32>
    %102 = arith.mulf %101, %48 : vector<8x128xf32>
    %103 = arith.addf %100, %102 : vector<8x128xf32>
    %c2_28 = arith.constant 2 : index
    %c0_29 = arith.constant 0 : index
    %c0_30 = arith.constant 0 : index
    %104 = vector.load %arg5[%c2_28, %c0_29, %c0_30] : memref<9x8x128xf32, #tpu.memory_space<vmem>>, vector<1x8x128xf32>
    %105 = vector.shape_cast %104 : vector<1x8x128xf32> to vector<8x128xf32>
    %106 = vector.shape_cast %103 : vector<8x128xf32> to vector<1x8x128xf32>
    tpu.vector_store %arg5[%c2_28, %c0_29, %c0_30], %106 {strides = array<i32>} : memref<9x8x128xf32, #tpu.memory_space<vmem>>, vector<1x8x128xf32>,
    %107 = vector.broadcast %65 : vector<8x1xf32> to vector<8x128xf32>
    %108 = arith.mulf %107, %50 : vector<8x128xf32>
    %109 = vector.broadcast %66 : vector<8x1xf32> to vector<8x128xf32>
    %110 = arith.mulf %109, %52 : vector<8x128xf32>
    %111 = arith.addf %108, %110 : vector<8x128xf32>
    %112 = vector.broadcast %67 : vector<8x1xf32> to vector<8x128xf32>
    %113 = arith.mulf %112, %54 : vector<8x128xf32>
    %114 = arith.addf %111, %113 : vector<8x128xf32>
    %c0_31 = arith.constant 0 : index
    %c0_32 = arith.constant 0 : index
    %c0_33 = arith.constant 0 : index
    %115 = vector.load %arg6[%c0_31, %c0_32, %c0_33] : memref<3x8x128xf32, #tpu.memory_space<vmem>>, vector<1x8x128xf32>
    %116 = vector.shape_cast %115 : vector<1x8x128xf32> to vector<8x128xf32>
    %117 = vector.shape_cast %114 : vector<8x128xf32> to vector<1x8x128xf32>
    tpu.vector_store %arg6[%c0_31, %c0_32, %c0_33], %117 {strides = array<i32>} : memref<3x8x128xf32, #tpu.memory_space<vmem>>, vector<1x8x128xf32>,
    %118 = vector.broadcast %59 : vector<8x1xf32> to vector<8x128xf32>
    %119 = arith.mulf %118, %36 : vector<8x128xf32>
    %120 = vector.broadcast %60 : vector<8x1xf32> to vector<8x128xf32>
    %121 = arith.mulf %120, %39 : vector<8x128xf32>
    %122 = arith.addf %119, %121 : vector<8x128xf32>
    %123 = vector.broadcast %61 : vector<8x1xf32> to vector<8x128xf32>
    %124 = arith.mulf %123, %44 : vector<8x128xf32>
    %125 = arith.addf %122, %124 : vector<8x128xf32>
    %c3_34 = arith.constant 3 : index
    %c0_35 = arith.constant 0 : index
    %c0_36 = arith.constant 0 : index
    %126 = vector.load %arg5[%c3_34, %c0_35, %c0_36] : memref<9x8x128xf32, #tpu.memory_space<vmem>>, vector<1x8x128xf32>
    %127 = vector.shape_cast %126 : vector<1x8x128xf32> to vector<8x128xf32>
    %128 = vector.shape_cast %125 : vector<8x128xf32> to vector<1x8x128xf32>
    tpu.vector_store %arg5[%c3_34, %c0_35, %c0_36], %128 {strides = array<i32>} : memref<9x8x128xf32, #tpu.memory_space<vmem>>, vector<1x8x128xf32>,
    %129 = vector.broadcast %59 : vector<8x1xf32> to vector<8x128xf32>
    %130 = arith.mulf %129, %37 : vector<8x128xf32>
    %131 = vector.broadcast %60 : vector<8x1xf32> to vector<8x128xf32>
    %132 = arith.mulf %131, %42 : vector<8x128xf32>
    %133 = arith.addf %130, %132 : vector<8x128xf32>
    %134 = vector.broadcast %61 : vector<8x1xf32> to vector<8x128xf32>
    %135 = arith.mulf %134, %45 : vector<8x128xf32>
    %136 = arith.addf %133, %135 : vector<8x128xf32>
    %c4 = arith.constant 4 : index
    %c0_37 = arith.constant 0 : index
    %c0_38 = arith.constant 0 : index
    %137 = vector.load %arg5[%c4, %c0_37, %c0_38] : memref<9x8x128xf32, #tpu.memory_space<vmem>>, vector<1x8x128xf32>
    %138 = vector.shape_cast %137 : vector<1x8x128xf32> to vector<8x128xf32>
    %139 = vector.shape_cast %136 : vector<8x128xf32> to vector<1x8x128xf32>
    tpu.vector_store %arg5[%c4, %c0_37, %c0_38], %139 {strides = array<i32>} : memref<9x8x128xf32, #tpu.memory_space<vmem>>, vector<1x8x128xf32>,
    %140 = vector.broadcast %59 : vector<8x1xf32> to vector<8x128xf32>
    %141 = arith.mulf %140, %38 : vector<8x128xf32>
    %142 = vector.broadcast %60 : vector<8x1xf32> to vector<8x128xf32>
    %143 = arith.mulf %142, %43 : vector<8x128xf32>
    %144 = arith.addf %141, %143 : vector<8x128xf32>
    %145 = vector.broadcast %61 : vector<8x1xf32> to vector<8x128xf32>
    %146 = arith.mulf %145, %48 : vector<8x128xf32>
    %147 = arith.addf %144, %146 : vector<8x128xf32>
    %c5 = arith.constant 5 : index
    %c0_39 = arith.constant 0 : index
    %c0_40 = arith.constant 0 : index
    %148 = vector.load %arg5[%c5, %c0_39, %c0_40] : memref<9x8x128xf32, #tpu.memory_space<vmem>>, vector<1x8x128xf32>
    %149 = vector.shape_cast %148 : vector<1x8x128xf32> to vector<8x128xf32>
    %150 = vector.shape_cast %147 : vector<8x128xf32> to vector<1x8x128xf32>
    tpu.vector_store %arg5[%c5, %c0_39, %c0_40], %150 {strides = array<i32>} : memref<9x8x128xf32, #tpu.memory_space<vmem>>, vector<1x8x128xf32>,
    %151 = vector.broadcast %68 : vector<8x1xf32> to vector<8x128xf32>
    %152 = arith.mulf %151, %50 : vector<8x128xf32>
    %153 = vector.broadcast %69 : vector<8x1xf32> to vector<8x128xf32>
    %154 = arith.mulf %153, %52 : vector<8x128xf32>
    %155 = arith.addf %152, %154 : vector<8x128xf32>
    %156 = vector.broadcast %70 : vector<8x1xf32> to vector<8x128xf32>
    %157 = arith.mulf %156, %54 : vector<8x128xf32>
    %158 = arith.addf %155, %157 : vector<8x128xf32>
    %c1_41 = arith.constant 1 : index
    %c0_42 = arith.constant 0 : index
    %c0_43 = arith.constant 0 : index
    %159 = vector.load %arg6[%c1_41, %c0_42, %c0_43] : memref<3x8x128xf32, #tpu.memory_space<vmem>>, vector<1x8x128xf32>
    %160 = vector.shape_cast %159 : vector<1x8x128xf32> to vector<8x128xf32>
    %161 = vector.shape_cast %158 : vector<8x128xf32> to vector<1x8x128xf32>
    tpu.vector_store %arg6[%c1_41, %c0_42, %c0_43], %161 {strides = array<i32>} : memref<3x8x128xf32, #tpu.memory_space<vmem>>, vector<1x8x128xf32>,
    %162 = vector.broadcast %62 : vector<8x1xf32> to vector<8x128xf32>
    %163 = arith.mulf %162, %36 : vector<8x128xf32>
    %164 = vector.broadcast %63 : vector<8x1xf32> to vector<8x128xf32>
    %165 = arith.mulf %164, %39 : vector<8x128xf32>
    %166 = arith.addf %163, %165 : vector<8x128xf32>
    %167 = vector.broadcast %64 : vector<8x1xf32> to vector<8x128xf32>
    %168 = arith.mulf %167, %44 : vector<8x128xf32>
    %169 = arith.addf %166, %168 : vector<8x128xf32>
    %c6 = arith.constant 6 : index
    %c0_44 = arith.constant 0 : index
    %c0_45 = arith.constant 0 : index
    %170 = vector.load %arg5[%c6, %c0_44, %c0_45] : memref<9x8x128xf32, #tpu.memory_space<vmem>>, vector<1x8x128xf32>
    %171 = vector.shape_cast %170 : vector<1x8x128xf32> to vector<8x128xf32>
    %172 = vector.shape_cast %169 : vector<8x128xf32> to vector<1x8x128xf32>
    tpu.vector_store %arg5[%c6, %c0_44, %c0_45], %172 {strides = array<i32>} : memref<9x8x128xf32, #tpu.memory_space<vmem>>, vector<1x8x128xf32>,
    %173 = vector.broadcast %62 : vector<8x1xf32> to vector<8x128xf32>
    %174 = arith.mulf %173, %37 : vector<8x128xf32>
    %175 = vector.broadcast %63 : vector<8x1xf32> to vector<8x128xf32>
    %176 = arith.mulf %175, %42 : vector<8x128xf32>
    %177 = arith.addf %174, %176 : vector<8x128xf32>
    %178 = vector.broadcast %64 : vector<8x1xf32> to vector<8x128xf32>
    %179 = arith.mulf %178, %45 : vector<8x128xf32>
    %180 = arith.addf %177, %179 : vector<8x128xf32>
    %c7 = arith.constant 7 : index
    %c0_46 = arith.constant 0 : index
    %c0_47 = arith.constant 0 : index
    %181 = vector.load %arg5[%c7, %c0_46, %c0_47] : memref<9x8x128xf32, #tpu.memory_space<vmem>>, vector<1x8x128xf32>
    %182 = vector.shape_cast %181 : vector<1x8x128xf32> to vector<8x128xf32>
    %183 = vector.shape_cast %180 : vector<8x128xf32> to vector<1x8x128xf32>
    tpu.vector_store %arg5[%c7, %c0_46, %c0_47], %183 {strides = array<i32>} : memref<9x8x128xf32, #tpu.memory_space<vmem>>, vector<1x8x128xf32>,
    %184 = vector.broadcast %62 : vector<8x1xf32> to vector<8x128xf32>
    %185 = arith.mulf %184, %38 : vector<8x128xf32>
    %186 = vector.broadcast %63 : vector<8x1xf32> to vector<8x128xf32>
    %187 = arith.mulf %186, %43 : vector<8x128xf32>
    %188 = arith.addf %185, %187 : vector<8x128xf32>
    %189 = vector.broadcast %64 : vector<8x1xf32> to vector<8x128xf32>
    %190 = arith.mulf %189, %48 : vector<8x128xf32>
    %191 = arith.addf %188, %190 : vector<8x128xf32>
    %c8 = arith.constant 8 : index
    %c0_48 = arith.constant 0 : index
    %c0_49 = arith.constant 0 : index
    %192 = vector.load %arg5[%c8, %c0_48, %c0_49] : memref<9x8x128xf32, #tpu.memory_space<vmem>>, vector<1x8x128xf32>
    %193 = vector.shape_cast %192 : vector<1x8x128xf32> to vector<8x128xf32>
    %194 = vector.shape_cast %191 : vector<8x128xf32> to vector<1x8x128xf32>
    tpu.vector_store %arg5[%c8, %c0_48, %c0_49], %194 {strides = array<i32>} : memref<9x8x128xf32, #tpu.memory_space<vmem>>, vector<1x8x128xf32>,
    %195 = vector.broadcast %71 : vector<8x1xf32> to vector<8x128xf32>
    %196 = arith.mulf %195, %50 : vector<8x128xf32>
    %197 = vector.broadcast %72 : vector<8x1xf32> to vector<8x128xf32>
    %198 = arith.mulf %197, %52 : vector<8x128xf32>
    %199 = arith.addf %196, %198 : vector<8x128xf32>
    %200 = vector.broadcast %73 : vector<8x1xf32> to vector<8x128xf32>
    %201 = arith.mulf %200, %54 : vector<8x128xf32>
    %202 = arith.addf %199, %201 : vector<8x128xf32>
    %c2_50 = arith.constant 2 : index
    %c0_51 = arith.constant 0 : index
    %c0_52 = arith.constant 0 : index
    %203 = vector.load %arg6[%c2_50, %c0_51, %c0_52] : memref<3x8x128xf32, #tpu.memory_space<vmem>>, vector<1x8x128xf32>
    %204 = vector.shape_cast %203 : vector<1x8x128xf32> to vector<8x128xf32>
    %205 = vector.shape_cast %202 : vector<8x128xf32> to vector<1x8x128xf32>
    tpu.vector_store %arg6[%c2_50, %c0_51, %c0_52], %205 {strides = array<i32>} : memref<3x8x128xf32, #tpu.memory_space<vmem>>, vector<1x8x128xf32>,
    return
  }
  func.func @transform_0(%arg0: i32, %arg1: i32) -> (i32, i32) {
    %c0_i32 = arith.constant 0 : i32
    %c0_i32_0 = arith.constant 0 : i32
    return %arg0, %c0_i32 : i32, i32
  }
  func.func @transform_1(%arg0: i32, %arg1: i32) -> (i32, i32, i32) {
    %c0_i32 = arith.constant 0 : i32
    %c0_i32_0 = arith.constant 0 : i32
    return %c0_i32, %arg0, %arg1 : i32, i32, i32
  }
  func.func @transform_2(%arg0: i32, %arg1: i32) -> (i32, i32, i32) {
    %c0_i32 = arith.constant 0 : i32
    %c0_i32_0 = arith.constant 0 : i32
    return %c0_i32, %arg0, %arg1 : i32, i32, i32
  }
  func.func @transform_3(%arg0: i32, %arg1: i32) -> (i32, i32, i32) {
    %c0_i32 = arith.constant 0 : i32
    %c0_i32_0 = arith.constant 0 : i32
    return %c0_i32, %arg0, %arg1 : i32, i32, i32
  }
  func.func @transform_4(%arg0: i32, %arg1: i32) -> (i32, i32, i32) {
    %c0_i32 = arith.constant 0 : i32
    %c0_i32_0 = arith.constant 0 : i32
    return %c0_i32, %arg0, %arg1 : i32, i32, i32
  }
}

</mosaic_0001>

<llo_original>
// kernel: custom-call.11
$region0: #{custom-call.11}
  %s0 = inlined_call_operand.vmem [shape: f32[2,3,3], index: 0, kind: input, shape index: {}]
  %s1 = inlined_call_operand.vmem [shape: f32[2,3,3], index: 1, kind: output, shape index: {0}]
  %s2 = inlined_call_operand.hbm [shape: s32[2,3], index: 2, kind: output, shape index: {1}]
  %s3 = inlined_call_operand.vmem [shape: s32[2,3], index: 3, kind: output, shape index: {2}]
  %4 = xla_tuple %s1, %s2, %s3
  $region1: #{custom-call.11} parent=0
    #allocation0 [shape = 'u8[4096]{0}', space=vmem, size = 0x1000, scoped, tag = 'operand span for operand 0']
    #allocation1 [shape = 'u8[4096]{0}', space=vmem, size = 0x1000, scoped, tag = 'packed  for operand 0']
    #allocation2 [shape = 'u8[4096]{0}', space=vmem, size = 0x1000, scoped, tag = 'operand span for operand 1']
    #allocation3 [shape = 'u8[4096]{0}', space=vmem, size = 0x1000, scoped, tag = 'packed  for operand 1']
    #allocation4 [shape = 'u8[4096]{0}', space=vmem, size = 0x1000, scoped, tag = 'operand span for operand 2']
    #allocation5 [shape = 'u8[2048]{0}', space=vmem, size = 0x800, scoped, tag = 'packed  for operand 2']
    #allocation6 [shape = 's32[2]{0}', space=sflag, size = 0x8, scoped, tag = 'scoped memory for custom-call.11']
    #allocation7 [shape = 'u8[4096]{0}', space=vmem, size = 0x1000, scoped, tag = 'operand span for operand 3']
    #allocation8 [shape = 'u8[2048]{0}', space=vmem, size = 0x800, scoped, tag = 'packed  for operand 3']
    %5 = vsyncpa [#allocation6], 0
    %s6 = scalar_lea.sflag [#allocation6], 1
    %7 = vsyncpa %s6, 0
    loop: start=0, step=1, limit=4
    $region2: #{custom-call.11} parent=1 // loop_pre_header
      _
    $region3: #{custom-call.11} parent=1 // loop_header
      %s9 = sphi 0, %s13
      %p10 = scmp.ge.s32.totalorder %s9, 4
      %s21 = sphi 0, %s23
      %s24 = sphi 0, %s21
      %s25 = sphi 0, %s24
      %s41 = sphi 0, %s25
      %s49 = sphi 0, %s51
      %s52 = sphi 0, %s49
      %s53 = sphi 0, %s52
      %s69 = sphi 0, %s53
    $region4: #{custom-call.11} parent=1 // loop_header_branch
      %12 = sbr.rel (%p10) target = $region8
    $region5: #{custom-call.11} parent=1 // loop_body
      %s14 = ssub.s32 %s9, 1
      %s15 = ssub.s32 %s9, 2
      %s16 = sadd.s32 %s9, 1
      %s17 = sshrl.u32 %s9, 3
      %s18 = sshrl.u32 %s16, 3
      %s19 = ssub.s32 %s17, %s18
      %p20 = scmp.eq.s32.totalorder %s19, 0
      %s22 = sadd.s32 %s21, 1
      %s23 = scalar_select %p20, %s21, %s22
      %p26 = pneg %p20
      %p27 = scmp.eq.s32.totalorder %s9, 1
      %p28 = por %p26, %p27
      %p29 = scmp.ne.s32.totalorder %s21, %s24
      %p30 = scmp.eq.s32.totalorder %s9, 0
      %p31 = por %p29, %p30
      %p32 = scmp.ne.s32.totalorder %s21, %s24
      %p33 = scmp.eq.s32.totalorder %s14, 1
      %p34 = por %p32, %p33
      %p35 = scmp.ne.s32.totalorder %s24, %s25
      %p36 = scmp.eq.s32.totalorder %s14, 0
      %p37 = por %p35, %p36
      %p38 = scmp.ne.s32.totalorder %s24, %s25
      %p39 = scmp.eq.s32.totalorder %s15, 1
      %p40 = por %p38, %p39
      %p42 = scmp.ne.s32.totalorder %s25, %s41
      %p43 = scmp.eq.s32.totalorder %s15, 0
      %p44 = por %p42, %p43
      %s45 = sshrl.u32 %s9, 3
      %s46 = sshrl.u32 %s16, 3
      %s47 = ssub.s32 %s45, %s46
      %p48 = scmp.eq.s32.totalorder %s47, 0
      %s50 = sadd.s32 %s49, 1
      %s51 = scalar_select %p48, %s49, %s50
      %p54 = pneg %p48
      %p55 = scmp.eq.s32.totalorder %s9, 1
      %p56 = por %p54, %p55
      %p57 = scmp.ne.s32.totalorder %s49, %s52
      %p58 = scmp.eq.s32.totalorder %s9, 0
      %p59 = por %p57, %p58
      %p60 = scmp.ne.s32.totalorder %s49, %s52
      %p61 = scmp.eq.s32.totalorder %s14, 1
      %p62 = por %p60, %p61
      %p63 = scmp.ne.s32.totalorder %s52, %s53
      %p64 = scmp.eq.s32.totalorder %s14, 0
      %p65 = por %p63, %p64
      %p66 = scmp.ne.s32.totalorder %s52, %s53
      %p67 = scmp.eq.s32.totalorder %s15, 1
      %p68 = por %p66, %p67
      %p70 = scmp.ne.s32.totalorder %s53, %s69
      %p71 = scmp.eq.s32.totalorder %s15, 0
      %p72 = por %p70, %p71
      %p73 = scmp.le.s32.totalorder 1, %s9
      %p74 = scmp.lt.s32.totalorder %s9, 3
      %p75 = pnand %p73, %p74
      %p76 = pneg %p75
      // Predicated region
      $region9: #{custom-call.11} parent=5 // pred_check
        _
      $region10: #{custom-call.11} parent=5 // pred_check_branch
        %78 = sbr.rel (%p75) target = $region12
      $region11: #{custom-call.11} parent=5 // pred_region
        %s79 = ssub.s32 %s9, 1
      $region12: #{custom-call.11} parent=5 // pred_fallthru
        _
      %p80 = scmp.lt.s32.totalorder %s9, 2
      // Predicated region
      $region13: #{custom-call.11} parent=5 // pred_check
        %p81 = pneg %p80
      $region14: #{custom-call.11} parent=5 // pred_check_branch
        %83 = sbr.rel (%p81) target = $region16
      $region15: #{custom-call.11} parent=5 // pred_region
        %s84 = sand.u32 %s9, 1
        %s85 = sand.u32 %s9, 1
        %s86 = smul.addr %s85, 4
        %s87 = scalar_lea.vmem [#allocation1], %s86
        %s88 = smul.addr %s9, 4
        %s89 = scalar_lea.vmem %s0, %s88
        // Predicated region
        $region17: #{custom-call.11} parent=15 // pred_check
          _
        $region18: #{custom-call.11} parent=15 // pred_check_branch
          %91 = sbr.rel (0) target = $region20
        $region19: #{custom-call.11} parent=15 // pred_region
          // Predicated region
          $region21: #{custom-call.11} parent=19 // pred_check
            _
          $region22: #{custom-call.11} parent=19 // pred_check_branch
            %93 = sbr.rel target = $region24
          $region23: #{custom-call.11} parent=19 // pred_region
            // Predicated region
            $region36: #{custom-call.11} parent=23 // pred_check
              _
            $region37: #{custom-call.11} parent=23 // pred_check_branch
              %109 = sbr.rel (0) target = $region39
            $region38: #{custom-call.11} parent=23 // pred_region
              %s111 = ssub.s32 16, 1
              loop: start=0, step=1, limit=1
              $region40: #{custom-call.11} parent=38 // loop_pre_header
                _
              $region41: #{custom-call.11} parent=38 // loop_header
                %s113 = sphi 0, %s117
                %p114 = scmp.ge.s32.totalorder %s113, 1
                %s118 = sphi %s89, %s89
                %s119 = sphi %s87, %s87
              $region42: #{custom-call.11} parent=38 // loop_header_branch
                %116 = sbr.rel (%p114) target = $region46
              $region43: #{custom-call.11} parent=38 // loop_body
                %v120 = vld [vmem:[%s118] sm:%s111]
                %121 = vst [vmem:[%s119] sm:%s111] %v120
              $region44: #{custom-call.11} parent=38 // loop_footer
                %s117 = sadd.s32 1, %s113
              $region45: #{custom-call.11} parent=38 // loop_footer_branch
                %112 = sbr.rel target = $region41
              $region46: #{custom-call.11} parent=38 // loop_exit
                _
            $region39: #{custom-call.11} parent=23 // pred_fallthru
              _
          $region24: #{custom-call.11} parent=19 // pred_fallthru
            _
          // Predicated region
          $region25: #{custom-call.11} parent=19 // pred_check
            _
          $region26: #{custom-call.11} parent=19 // pred_check_branch
            %95 = sbr.rel (0) target = $region28
          $region27: #{custom-call.11} parent=19 // pred_region
            %s97 = ssub.s32 16, 1
            loop: start=0, step=1, limit=1
            $region29: #{custom-call.11} parent=27 // loop_pre_header
              _
            $region30: #{custom-call.11} parent=27 // loop_header
              %s99 = sphi 0, %s103
              %p100 = scmp.ge.s32.totalorder %s99, 1
              %s104 = sphi %s89, %s89
              %s105 = sphi %s87, %s87
            $region31: #{custom-call.11} parent=27 // loop_header_branch
              %102 = sbr.rel (%p100) target = $region35
            $region32: #{custom-call.11} parent=27 // loop_body
              %v106 = vld [vmem:[%s104] sm:%s97]
              %107 = vst [vmem:[%s105] sm:%s97] %v106
            $region33: #{custom-call.11} parent=27 // loop_footer
              %s103 = sadd.s32 1, %s99
            $region34: #{custom-call.11} parent=27 // loop_footer_branch
              %98 = sbr.rel target = $region30
            $region35: #{custom-call.11} parent=27 // loop_exit
              _
          $region28: #{custom-call.11} parent=19 // pred_fallthru
            _
        $region20: #{custom-call.11} parent=15 // pred_fallthru
          _
        %122 = vnop
      $region16: #{custom-call.11} parent=5 // pred_fallthru
        _
      %p123 = scmp.le.s32.totalorder 1, %s9
      %p124 = scmp.lt.s32.totalorder %s9, 3
      %p125 = pnand %p123, %p124
      %p126 = pneg %p125
      // Predicated region
      $region47: #{custom-call.11} parent=5 // pred_check
        _
      $region48: #{custom-call.11} parent=5 // pred_check_branch
        %128 = sbr.rel (%p125) target = $region50
      $region49: #{custom-call.11} parent=5 // pred_region
        #allocation9 [shape = 's32[3,128]{1,0}', space=vmem, size = 0x1000, scoped, tag = 'scratch for permutations']
        %s129 = ssub.s32 %s9, 1
        %s130 = sand.u32 %s14, 1
        %s131 = sand.u32 %s14, 1
        %s132 = smul.addr %s131, 4
        %s133 = scalar_lea.vmem [#allocation1], %s132
        %s134 = sand.u32 %s14, 1
        %s135 = sand.u32 %s14, 1
        %s136 = smul.addr %s135, 4
        %s137 = scalar_lea.vmem [#allocation1], %s136
        %s138 = sand.u32 %s14, 1
        %s139 = sand.u32 %s14, 1
        %s140 = smul.addr %s139, 4
        %s141 = scalar_lea.vmem [#allocation3], %s140
        %p142 = pneg %p37
        %p143 = pneg %p34
        %s144 = sand.u32 %s24, 1
        %s145 = scalar_lea.sflag [#allocation6], %s144
        %s146 = sand.u32 %s24, 1
        %s147 = smul.addr %s146, 2
        %s148 = scalar_lea.vmem [#allocation5], %s147
        %p149 = pneg %p65
        %p150 = pneg %p62
        %s151 = sand.u32 %s52, 1
        %s152 = sand.u32 %s52, 1
        %s153 = smul.addr %s152, 2
        %s154 = scalar_lea.vmem [#allocation8], %s153
        %s156 = ssub.s32 16, 1
        %v157 = vld [vmem:[%s137] sm:%s156]
        %158 = vst [vmem:[#allocation0] sm:%s156] %v157
        %s159 = sshrl.u32 %s14, 3
        %s160 = sshrl.u32 %s14, 3
        %v161 = vld [vmem:[#allocation0] sm:$0xff]
        %162 = vst [vmem:[#allocation2] sm:$0xff] %v161
        %s163 = sand.u32 %s14, 7
        %s164 = scalar_lea.vmem [#allocation4], %s163
        %s165 = sand.u32 %s14, 7
        %s166 = scalar_lea.vmem [#allocation7], %s165
        %167 = vst [vmem:[%s164] sm:$0x1] 0
        %v168 = vlaneseq
        %v169 = vshrl.u32 %v168, 7
        %v170 = vmov %v169
        %172 = vst [vmem:[#allocation9] sm:$0xff] %v170
        loop: start=0, step=1, limit=3
        $region52: #{custom-call.11} parent=49 // loop_pre_header
          _
        $region53: #{custom-call.11} parent=49 // loop_header
          %s174 = sphi 0, %s178
          %p175 = scmp.ge.s32.totalorder %s174, 3
        $region54: #{custom-call.11} parent=49 // loop_header_branch
          %177 = sbr.rel (%p175) target = $region58
        $region55: #{custom-call.11} parent=49 // loop_body
          %v179 = vstv %s174
          %v180 = vlaneseq
          %v181 = vshrl.u32 %v180, 7
          %v182 = vmov %v181
          %v183 = vld [vmem:[#allocation2] sm:$0xff]
          %v184 = vand.u32 2147483647, %v183
          %v186 = vstv %s174
          %vm187 = vcmp.ge.s32.totalorder %v182, %v186
          %vm188 = vcmp.lt.s32.totalorder %v182, 3
          %vm189 = vmand %vm187, %vm188
          %vm190 = vcmp.lt.f32.partialorder -inf, %v184
          %vm191 = vmand %vm189, %vm190
          %v192 = vsel %vm191, %v182, %v179
          %v193 = vsel %vm191, %v184, -inf
          %v194 = vrot.slane %v193, 1
          %v195 = vrot.slane %v192, 1
          %vm196 = vcmp.ge.f32.partialorder %v194, %v193
          %v197 = vsel %vm196, %v194, %v193
          %v198 = vsel %vm196, %v195, %v192
          %v199 = vrot.slane %v194, 1
          %v200 = vrot.slane %v195, 1
          %vm201 = vcmp.ge.f32.partialorder %v199, %v197
          %v202 = vsel %vm201, %v199, %v197
          %v203 = vsel %vm201, %v200, %v198
          %v204 = vrot.slane %v199, 1
          %v205 = vrot.slane %v200, 1
          %vm206 = vcmp.ge.f32.partialorder %v204, %v202
          %v207 = vsel %vm206, %v204, %v202
          %v208 = vsel %vm206, %v205, %v203
          %v209 = vrot.slane %v204, 1
          %v210 = vrot.slane %v205, 1
          %vm211 = vcmp.ge.f32.partialorder %v209, %v207
          %v212 = vsel %vm211, %v209, %v207
          %v213 = vsel %vm211, %v210, %v208
          %v214 = vrot.slane %v209, 1
          %v215 = vrot.slane %v210, 1
          %vm216 = vcmp.ge.f32.partialorder %v214, %v212
          %v217 = vsel %vm216, %v214, %v212
          %v218 = vsel %vm216, %v215, %v213
          %v219 = vrot.slane %v214, 1
          %v220 = vrot.slane %v215, 1
          %vm221 = vcmp.ge.f32.partialorder %v219, %v217
          %v222 = vsel %vm221, %v219, %v217
          %v223 = vsel %vm221, %v220, %v218
          %v224 = vrot.slane %v219, 1
          %v225 = vrot.slane %v220, 1
          %vm226 = vcmp.ge.f32.partialorder %v224, %v222
          %v227 = vsel %vm226, %v224, %v222
          %v228 = vsel %vm226, %v225, %v223
          %s229 = ssub.s32 128, %s174
          %230 = vrot.lane.b32.xlu0 %v228, %s229
          %v231 = vpop.permute.xlu0 %230
          %s232 = vtos %v231
          %v233 = vstv %s174
          %v234 = vlaneseq
          %v235 = vand.u32 %v234, 127
          %vm236 = vcmp.eq.s32.totalorder %v235, %v233
          %v237 = vstv %s232
          %v238 = vld [vmem:[%s164] ss:$0 sm:$0xff]
          %v239 = vsel %vm236, %v237, %v238
          %240 = vst [vmem:[%s164] sm:$0x1] %v239
          %s241 = scalar_lea.vmem [#allocation2], %s174
          %s242 = scalar_lea.vmem [#allocation2], %s232
          %v243 = vld [vmem:[%s241] ss:$0 sm:$0xff]
          %v244 = vld [vmem:[%s242] ss:$0 sm:$0xff]
          %245 = vst [vmem:[%s242] sm:$0x1] %v243
          %246 = vst [vmem:[%s241] sm:$0x1] %v244
          %s247 = scalar_lea.vmem [#allocation9], %s174
          %s248 = scalar_lea.vmem [#allocation9], %s232
          %v249 = vld [vmem:[%s247] ss:$0 sm:$0xff]
          %v250 = vld [vmem:[%s248] ss:$0 sm:$0xff]
          %251 = vst [vmem:[%s248] sm:$0x1] %v249
          %252 = vst [vmem:[%s247] sm:$0x1] %v250
          %vm253 = vcmp.ne.f32.partialorder %v244, 0.0
          %vm254 = vmand %vm236, %vm253
          %v255 = vsel %vm254, %v244, 1.0
          %v256 = vlaneseq
          %v257 = vand.u32 %v256, 127
          %v258 = vstv %s174
          %vm259 = vcmp.gt.s32.totalorder %v257, %v258
          %v260 = vsel %vm259, %v244, 0.0
          %v261 = vlaneseq
          %v262 = vshrl.u32 %v261, 7
          %v263 = vmov %v262
          %v264 = vld [vmem:[#allocation2] sm:$0xff]
          %v266 = vstv %s174
          %vm267 = vcmp.gt.s32.totalorder %v263, %v266
          %v268 = vsel %vm267, %v255, 1.0
          %v269 = vrcp.pop %v268
          %v270 = vmul.f32 %v268, %v269
          %v271 = vsub.f32 1.0, %v270
          %v272 = vmul.f32 %v269, %v271
          %v273 = vadd.f32 %v269, %v272
          %vm274 = vweird.f32 %v268
          %vm275 = vweird.f32 %v269
          %vm276 = vmor %vm274, %vm275
          %v277 = vsel %vm276, %v269, %v273
          %v278 = vand.u32 2147483647, %v268
          %vm279 = vcmp.eq.f32.partialorder %v278, 8.507059e+37
          %v280 = vand.u32 %v268, 2147483648
          %v281 = vor.u32 1.1754944e-38, %v280
          %v282 = vsel %vm279, %v281, %v277
          %v283 = vmul.f32 %v264, %v282
          %vm284 = vmand %vm267, %vm236
          %v285 = vsel %vm284, %v283, 0.0
          %286 = vadd.xlane.f32.xlu0 %v285
          %v287 = vpop.xlane.xlu0 %286
          %v288 = vmul.f32 %v287, %v260
          %v289 = vsub.f32 %v283, %v288
          %290 = vst [vmem:[#allocation2] sm:$0xff] %v289
        $region56: #{custom-call.11} parent=49 // loop_footer
          %s178 = sadd.s32 1, %s174
        $region57: #{custom-call.11} parent=49 // loop_footer_branch
          %173 = sbr.rel target = $region53
        $region58: #{custom-call.11} parent=49 // loop_exit
          _
        %v291 = vld [vmem:[#allocation9] sm:$0xff]
        %s292 = scalar_lea.vmem [#allocation9], 8
        %s293 = scalar_lea.vmem [#allocation9], 16
        %s294 = scalar_lea.vmem [#allocation9], 24
        %s295 = scalar_lea.vmem [#allocation9], 32
        %s296 = scalar_lea.vmem [#allocation9], 40
        %s297 = scalar_lea.vmem [#allocation9], 48
        %s298 = scalar_lea.vmem [#allocation9], 56
        %s299 = scalar_lea.vmem [#allocation9], 64
        %s300 = scalar_lea.vmem [#allocation9], 72
        %s301 = scalar_lea.vmem [#allocation9], 80
        %s302 = scalar_lea.vmem [#allocation9], 88
        %s303 = scalar_lea.vmem [#allocation9], 96
        %s304 = scalar_lea.vmem [#allocation9], 104
        %s305 = scalar_lea.vmem [#allocation9], 112
        %s306 = scalar_lea.vmem [#allocation9], 120
        %307 = vxpose.xlu0.b32.start [1/16] %v291, 128
        %308 = vxpose.xlu0.b32.cont [2/16] 0, 128
        %309 = vxpose.xlu0.b32.cont [3/16] 0, 128
        %310 = vxpose.xlu0.b32.cont [4/16] 0, 128
        %311 = vxpose.xlu0.b32.cont [5/16] 0, 128
        %312 = vxpose.xlu0.b32.cont [6/16] 0, 128
        %313 = vxpose.xlu0.b32.cont [7/16] 0, 128
        %314 = vxpose.xlu0.b32.cont [8/16] 0, 128
        %315 = vxpose.xlu0.b32.cont [9/16] 0, 128
        %316 = vxpose.xlu0.b32.cont [10/16] 0, 128
        %317 = vxpose.xlu0.b32.cont [11/16] 0, 128
        %318 = vxpose.xlu0.b32.cont [12/16] 0, 128
        %319 = vxpose.xlu0.b32.cont [13/16] 0, 128
        %320 = vxpose.xlu0.b32.cont [14/16] 0, 128
        %321 = vxpose.xlu0.b32.cont [15/16] 0, 128
        %322 = vxpose.xlu0.b32.end [16/16] 0, 128
        %v323 = vpop.trf.xlu0
        %v324 = vpop.trf.xlu0
        %v325 = vpop.trf.xlu0
        %v326 = vpop.trf.xlu0
        %v327 = vpop.trf.xlu0
        %v328 = vpop.trf.xlu0
        %v329 = vpop.trf.xlu0
        %v330 = vpop.trf.xlu0
        %v331 = vpop.trf.xlu0
        %v332 = vpop.trf.xlu0
        %v333 = vpop.trf.xlu0
        %v334 = vpop.trf.xlu0
        %v335 = vpop.trf.xlu0
        %v336 = vpop.trf.xlu0
        %v337 = vpop.trf.xlu0
        %v338 = vpop.trf.xlu0
        %339 = vst [vmem:[%s166] sm:$0x1] %v323
        %s341 = ssub.s32 16, 1
        %v342 = vld [vmem:[#allocation2] sm:%s341]
        %s344 = ssub.s32 16, 1
        %345 = vst [vmem:[%s141] sm:%s344] %v342
        %s347 = ssub.s32 4, 1
        %v348 = vld [vmem:[#allocation4] sm:%s347]
        %s350 = ssub.s32 4, 1
        %351 = vst [vmem:[%s148] sm:%s350] %v348
        %s353 = ssub.s32 4, 1
        %v354 = vld [vmem:[#allocation7] sm:%s353]
        %s356 = ssub.s32 4, 1
        %357 = vst [vmem:[%s154] sm:%s356] %v354
        %s358 = sand.u32 %s14, 1
        %s359 = sand.u32 %s14, 1
        %s360 = smul.addr %s359, 4
        %s361 = scalar_lea.vmem [#allocation3], %s360
        %s362 = sand.u32 %s24, 1
        %s363 = scalar_lea.sflag [#allocation6], %s362
        %s364 = sand.u32 %s24, 1
        %s365 = smul.addr %s364, 2
        %s366 = scalar_lea.vmem [#allocation5], %s365
        %s367 = sand.u32 %s52, 1
        %s368 = sand.u32 %s52, 1
        %s369 = smul.addr %s368, 2
        %s370 = scalar_lea.vmem [#allocation8], %s369
        %s371 = smul.addr %s14, 4
        %s372 = scalar_lea.vmem %s1, %s371
        // Predicated region
        $region59: #{custom-call.11} parent=49 // pred_check
          _
        $region60: #{custom-call.11} parent=49 // pred_check_branch
          %374 = sbr.rel (0) target = $region62
        $region61: #{custom-call.11} parent=49 // pred_region
          // Predicated region
          $region63: #{custom-call.11} parent=61 // pred_check
            _
          $region64: #{custom-call.11} parent=61 // pred_check_branch
            %376 = sbr.rel target = $region66
          $region65: #{custom-call.11} parent=61 // pred_region
            // Predicated region
            $region78: #{custom-call.11} parent=65 // pred_check
              _
            $region79: #{custom-call.11} parent=65 // pred_check_branch
              %392 = sbr.rel (0) target = $region81
            $region80: #{custom-call.11} parent=65 // pred_region
              %s394 = ssub.s32 16, 1
              loop: start=0, step=1, limit=1
              $region82: #{custom-call.11} parent=80 // loop_pre_header
                _
              $region83: #{custom-call.11} parent=80 // loop_header
                %s396 = sphi 0, %s400
                %p397 = scmp.ge.s32.totalorder %s396, 1
                %s401 = sphi %s361, %s361
                %s402 = sphi %s372, %s372
              $region84: #{custom-call.11} parent=80 // loop_header_branch
                %399 = sbr.rel (%p397) target = $region88
              $region85: #{custom-call.11} parent=80 // loop_body
                %v403 = vld [vmem:[%s401] sm:%s394]
                %404 = vst [vmem:[%s402] sm:%s394] %v403
              $region86: #{custom-call.11} parent=80 // loop_footer
                %s400 = sadd.s32 1, %s396
              $region87: #{custom-call.11} parent=80 // loop_footer_branch
                %395 = sbr.rel target = $region83
              $region88: #{custom-call.11} parent=80 // loop_exit
                _
            $region81: #{custom-call.11} parent=65 // pred_fallthru
              _
          $region66: #{custom-call.11} parent=61 // pred_fallthru
            _
          // Predicated region
          $region67: #{custom-call.11} parent=61 // pred_check
            _
          $region68: #{custom-call.11} parent=61 // pred_check_branch
            %378 = sbr.rel (0) target = $region70
          $region69: #{custom-call.11} parent=61 // pred_region
            %s380 = ssub.s32 16, 1
            loop: start=0, step=1, limit=1
            $region71: #{custom-call.11} parent=69 // loop_pre_header
              _
            $region72: #{custom-call.11} parent=69 // loop_header
              %s382 = sphi 0, %s386
              %p383 = scmp.ge.s32.totalorder %s382, 1
              %s387 = sphi %s361, %s361
              %s388 = sphi %s372, %s372
            $region73: #{custom-call.11} parent=69 // loop_header_branch
              %385 = sbr.rel (%p383) target = $region77
            $region74: #{custom-call.11} parent=69 // loop_body
              %v389 = vld [vmem:[%s387] sm:%s380]
              %390 = vst [vmem:[%s388] sm:%s380] %v389
            $region75: #{custom-call.11} parent=69 // loop_footer
              %s386 = sadd.s32 1, %s382
            $region76: #{custom-call.11} parent=69 // loop_footer_branch
              %381 = sbr.rel target = $region72
            $region77: #{custom-call.11} parent=69 // loop_exit
              _
          $region70: #{custom-call.11} parent=61 // pred_fallthru
            _
        $region62: #{custom-call.11} parent=49 // pred_fallthru
          _
        %405 = vnop
        // Predicated region
        $region89: #{custom-call.11} parent=49 // pred_check
          %p406 = pneg %p34
        $region90: #{custom-call.11} parent=49 // pred_check_branch
          %408 = sbr.rel (%p406) target = $region92
        $region91: #{custom-call.11} parent=49 // pred_region
          %s409 = sshrl.u32 %s14, 3
          %411 = vsyncadd %s363, 0
          %s412 = smul.addr %s409, 2
          %s413 = scalar_lea.hbm %s2, %s412
          %s415 = sshll.u32 %s366, 4
          %s416 = int_to_ptr.vmem [resolvable:$true] %s415
          %s417 = sshll.u32 %s413, 4
          %s418 = int_to_ptr.hbm [resolvable:$true] %s417
          %420 = dma.vmem_to_hbm [thread:$0]  %s416, 32, %s418, %s363
        $region92: #{custom-call.11} parent=49 // pred_fallthru
          _
        // Predicated region
        $region93: #{custom-call.11} parent=49 // pred_check
          %p421 = pneg %p62
        $region94: #{custom-call.11} parent=49 // pred_check_branch
          %423 = sbr.rel (%p421) target = $region96
        $region95: #{custom-call.11} parent=49 // pred_region
          %s424 = sshrl.u32 %s14, 3
          %s425 = smul.addr %s424, 2
          %s426 = scalar_lea.vmem %s3, %s425
          // Predicated region
          $region97: #{custom-call.11} parent=95 // pred_check
            _
          $region98: #{custom-call.11} parent=95 // pred_check_branch
            %428 = sbr.rel (0) target = $region100
          $region99: #{custom-call.11} parent=95 // pred_region
            // Predicated region
            $region101: #{custom-call.11} parent=99 // pred_check
              _
            $region102: #{custom-call.11} parent=99 // pred_check_branch
              %430 = sbr.rel target = $region104
            $region103: #{custom-call.11} parent=99 // pred_region
              // Predicated region
              $region116: #{custom-call.11} parent=103 // pred_check
                _
              $region117: #{custom-call.11} parent=103 // pred_check_branch
                %446 = sbr.rel (0) target = $region119
              $region118: #{custom-call.11} parent=103 // pred_region
                %s448 = ssub.s32 4, 1
                loop: start=0, step=1, limit=1
                $region120: #{custom-call.11} parent=118 // loop_pre_header
                  _
                $region121: #{custom-call.11} parent=118 // loop_header
                  %s450 = sphi 0, %s454
                  %p451 = scmp.ge.s32.totalorder %s450, 1
                  %s455 = sphi %s370, %s370
                  %s456 = sphi %s426, %s426
                $region122: #{custom-call.11} parent=118 // loop_header_branch
                  %453 = sbr.rel (%p451) target = $region126
                $region123: #{custom-call.11} parent=118 // loop_body
                  %v457 = vld [vmem:[%s455] sm:%s448]
                  %458 = vst [vmem:[%s456] sm:%s448] %v457
                $region124: #{custom-call.11} parent=118 // loop_footer
                  %s454 = sadd.s32 1, %s450
                $region125: #{custom-call.11} parent=118 // loop_footer_branch
                  %449 = sbr.rel target = $region121
                $region126: #{custom-call.11} parent=118 // loop_exit
                  _
              $region119: #{custom-call.11} parent=103 // pred_fallthru
                _
            $region104: #{custom-call.11} parent=99 // pred_fallthru
              _
            // Predicated region
            $region105: #{custom-call.11} parent=99 // pred_check
              _
            $region106: #{custom-call.11} parent=99 // pred_check_branch
              %432 = sbr.rel (0) target = $region108
            $region107: #{custom-call.11} parent=99 // pred_region
              %s434 = ssub.s32 4, 1
              loop: start=0, step=1, limit=1
              $region109: #{custom-call.11} parent=107 // loop_pre_header
                _
              $region110: #{custom-call.11} parent=107 // loop_header
                %s436 = sphi 0, %s440
                %p437 = scmp.ge.s32.totalorder %s436, 1
                %s441 = sphi %s370, %s370
                %s442 = sphi %s426, %s426
              $region111: #{custom-call.11} parent=107 // loop_header_branch
                %439 = sbr.rel (%p437) target = $region115
              $region112: #{custom-call.11} parent=107 // loop_body
                %v443 = vld [vmem:[%s441] sm:%s434]
                %444 = vst [vmem:[%s442] sm:%s434] %v443
              $region113: #{custom-call.11} parent=107 // loop_footer
                %s440 = sadd.s32 1, %s436
              $region114: #{custom-call.11} parent=107 // loop_footer_branch
                %435 = sbr.rel target = $region110
              $region115: #{custom-call.11} parent=107 // loop_exit
                _
            $region108: #{custom-call.11} parent=99 // pred_fallthru
              _
          $region100: #{custom-call.11} parent=95 // pred_fallthru
            _
          %459 = vnop
        $region96: #{custom-call.11} parent=49 // pred_fallthru
          _
      $region50: #{custom-call.11} parent=5 // pred_fallthru
        _
      %p460 = scmp.le.s32.totalorder 2, %s9
      // Predicated region
      $region127: #{custom-call.11} parent=5 // pred_check
        %p461 = pneg %p460
      $region128: #{custom-call.11} parent=5 // pred_check_branch
        %463 = sbr.rel (%p461) target = $region130
      $region129: #{custom-call.11} parent=5 // pred_region
        %s464 = ssub.s32 %s9, 2
        %s465 = sand.u32 %s15, 1
        %s466 = sand.u32 %s15, 1
        %s467 = smul.addr %s466, 4
        %s468 = scalar_lea.vmem [#allocation3], %s467
        // Predicated region
        $region131: #{custom-call.11} parent=129 // pred_check
          %p469 = pneg %p40
        $region132: #{custom-call.11} parent=129 // pred_check_branch
          %471 = sbr.rel (%p469) target = $region134
        $region133: #{custom-call.11} parent=129 // pred_region
          %s472 = sand.u32 %s25, 1
          %s473 = scalar_lea.sflag [#allocation6], %s472
          %s474 = sand.u32 %s25, 1
          %s475 = smul.addr %s474, 2
          %s476 = scalar_lea.vmem [#allocation5], %s475
          %478 = dma.done %s473, 32
        $region134: #{custom-call.11} parent=129 // pred_fallthru
          _
        // Predicated region
        $region135: #{custom-call.11} parent=129 // pred_check
          %p479 = pneg %p68
        $region136: #{custom-call.11} parent=129 // pred_check_branch
          %481 = sbr.rel (%p479) target = $region138
        $region137: #{custom-call.11} parent=129 // pred_region
          %s482 = sand.u32 %s53, 1
          %s483 = sand.u32 %s53, 1
          %s484 = smul.addr %s483, 2
          %s485 = scalar_lea.vmem [#allocation8], %s484
        $region138: #{custom-call.11} parent=129 // pred_fallthru
          _
      $region130: #{custom-call.11} parent=5 // pred_fallthru
        _
    $region6: #{custom-call.11} parent=1 // loop_footer
      %s13 = sadd.s32 1, %s9
    $region7: #{custom-call.11} parent=1 // loop_footer_branch
      %8 = sbr.rel target = $region3
    $region8: #{custom-call.11} parent=1 // loop_exit
      _
    %486 = vsyncpa [#allocation6], 1
    %s487 = scalar_lea.sflag [#allocation6], 1
    %488 = vsyncpa %s487, 1

// kernel: custom-call.12
$region0: #{custom-call.12}
  %s0 = inlined_call_operand.vmem [shape: f32[2,1,3,3], index: 0, kind: input, shape index: {}]
  %s1 = inlined_call_operand.vmem [shape: f32[2,1,3,3], index: 1, kind: output, shape index: {}]
  $region1: #{custom-call.12} parent=0
    #allocation0 [shape = 'u8[4096]{0}', space=vmem, size = 0x1000, scoped, tag = 'operand span for operand 0']
    #allocation1 [shape = 'u8[4096]{0}', space=vmem, size = 0x1000, scoped, tag = 'packed  for operand 0']
    #allocation2 [shape = 'u8[4096]{0}', space=vmem, size = 0x1000, scoped, tag = 'operand span for operand 1']
    #allocation3 [shape = 'u8[4096]{0}', space=vmem, size = 0x1000, scoped, tag = 'packed  for operand 1']
    loop: start=0, step=1, limit=4
    $region2: #{custom-call.12} parent=1 // loop_pre_header
      _
    $region3: #{custom-call.12} parent=1 // loop_header
      %s3 = sphi 0, %s7
      %p4 = scmp.ge.s32.totalorder %s3, 4
      %s10 = sphi 0, %s36
      %s11 = sphi 0, %s32
      %s12 = sphi 0, %s28
      %s13 = sphi 0, %s24
      %s14 = sphi 0, %s10
      %s15 = sphi 0, %s11
      %s16 = sphi 0, %s12
      %s17 = sphi 0, %s13
      %s18 = sphi 0, %s14
      %s19 = sphi 0, %s15
      %s20 = sphi 0, %s16
      %s21 = sphi 0, %s17
    $region4: #{custom-call.12} parent=1 // loop_header_branch
      %6 = sbr.rel (%p4) target = $region8
    $region5: #{custom-call.12} parent=1 // loop_body
      %s8 = ssub.s32 %s3, 1
      %s9 = ssub.s32 %s3, 2
      %s22 = sadd.s32 1, %s13
      %p23 = scmp.ge.s32.totalorder %s22, 1
      %s24 = scalar_select %p23, 0, %s22
      %s25 = sadd.s32 1, %s12
      %s26 = scalar_select %p23, %s25, %s12
      %p27 = scmp.ge.s32.totalorder %s26, 1
      %s28 = scalar_select %p27, 0, %s26
      %s29 = sadd.s32 1, %s11
      %s30 = scalar_select %p27, %s29, %s11
      %p31 = scmp.ge.s32.totalorder %s30, 1
      %s32 = scalar_select %p31, 0, %s30
      %s33 = sadd.s32 1, %s10
      %s34 = scalar_select %p31, %s33, %s10
      %p35 = scmp.ge.s32.totalorder %s34, 2
      %s36 = scalar_select %p35, 0, %s34
      %p37 = scmp.le.s32.totalorder 1, %s3
      %p38 = scmp.lt.s32.totalorder %s3, 3
      %p39 = pnand %p37, %p38
      %p40 = pneg %p39
      // Predicated region
      $region9: #{custom-call.12} parent=5 // pred_check
        _
      $region10: #{custom-call.12} parent=5 // pred_check_branch
        %42 = sbr.rel (%p39) target = $region12
      $region11: #{custom-call.12} parent=5 // pred_region
        %s43 = ssub.s32 %s3, 1
      $region12: #{custom-call.12} parent=5 // pred_fallthru
        _
      %p44 = scmp.lt.s32.totalorder %s3, 2
      // Predicated region
      $region13: #{custom-call.12} parent=5 // pred_check
        %p45 = pneg %p44
      $region14: #{custom-call.12} parent=5 // pred_check_branch
        %47 = sbr.rel (%p45) target = $region16
      $region15: #{custom-call.12} parent=5 // pred_region
        %s48 = sand.u32 %s3, 1
        %s49 = sand.u32 %s3, 1
        %s50 = smul.addr %s49, 4
        %s51 = scalar_lea.vmem [#allocation1], %s50
        %s52 = sadd.s32 %s13, %s12
        %s53 = sadd.s32 %s52, %s11
        %s54 = sadd.s32 %s53, %s10
        %s55 = smul.addr %s54, 4
        %s56 = scalar_lea.vmem %s0, %s55
        // Predicated region
        $region17: #{custom-call.12} parent=15 // pred_check
          _
        $region18: #{custom-call.12} parent=15 // pred_check_branch
          %58 = sbr.rel (0) target = $region20
        $region19: #{custom-call.12} parent=15 // pred_region
          // Predicated region
          $region21: #{custom-call.12} parent=19 // pred_check
            _
          $region22: #{custom-call.12} parent=19 // pred_check_branch
            %60 = sbr.rel target = $region24
          $region23: #{custom-call.12} parent=19 // pred_region
            // Predicated region
            $region36: #{custom-call.12} parent=23 // pred_check
              _
            $region37: #{custom-call.12} parent=23 // pred_check_branch
              %76 = sbr.rel (0) target = $region39
            $region38: #{custom-call.12} parent=23 // pred_region
              %s78 = ssub.s32 16, 1
              loop: start=0, step=1, limit=1
              $region40: #{custom-call.12} parent=38 // loop_pre_header
                _
              $region41: #{custom-call.12} parent=38 // loop_header
                %s80 = sphi 0, %s84
                %p81 = scmp.ge.s32.totalorder %s80, 1
                %s85 = sphi %s56, %s56
                %s86 = sphi %s51, %s51
              $region42: #{custom-call.12} parent=38 // loop_header_branch
                %83 = sbr.rel (%p81) target = $region46
              $region43: #{custom-call.12} parent=38 // loop_body
                %v87 = vld [vmem:[%s85] sm:%s78]
                %88 = vst [vmem:[%s86] sm:%s78] %v87
              $region44: #{custom-call.12} parent=38 // loop_footer
                %s84 = sadd.s32 1, %s80
              $region45: #{custom-call.12} parent=38 // loop_footer_branch
                %79 = sbr.rel target = $region41
              $region46: #{custom-call.12} parent=38 // loop_exit
                _
            $region39: #{custom-call.12} parent=23 // pred_fallthru
              _
          $region24: #{custom-call.12} parent=19 // pred_fallthru
            _
          // Predicated region
          $region25: #{custom-call.12} parent=19 // pred_check
            _
          $region26: #{custom-call.12} parent=19 // pred_check_branch
            %62 = sbr.rel (0) target = $region28
          $region27: #{custom-call.12} parent=19 // pred_region
            %s64 = ssub.s32 16, 1
            loop: start=0, step=1, limit=1
            $region29: #{custom-call.12} parent=27 // loop_pre_header
              _
            $region30: #{custom-call.12} parent=27 // loop_header
              %s66 = sphi 0, %s70
              %p67 = scmp.ge.s32.totalorder %s66, 1
              %s71 = sphi %s56, %s56
              %s72 = sphi %s51, %s51
            $region31: #{custom-call.12} parent=27 // loop_header_branch
              %69 = sbr.rel (%p67) target = $region35
            $region32: #{custom-call.12} parent=27 // loop_body
              %v73 = vld [vmem:[%s71] sm:%s64]
              %74 = vst [vmem:[%s72] sm:%s64] %v73
            $region33: #{custom-call.12} parent=27 // loop_footer
              %s70 = sadd.s32 1, %s66
            $region34: #{custom-call.12} parent=27 // loop_footer_branch
              %65 = sbr.rel target = $region30
            $region35: #{custom-call.12} parent=27 // loop_exit
              _
          $region28: #{custom-call.12} parent=19 // pred_fallthru
            _
        $region20: #{custom-call.12} parent=15 // pred_fallthru
          _
        %89 = vnop
      $region16: #{custom-call.12} parent=5 // pred_fallthru
        _
      %p90 = scmp.le.s32.totalorder 1, %s3
      %p91 = scmp.lt.s32.totalorder %s3, 3
      %p92 = pnand %p90, %p91
      %p93 = pneg %p92
      // Predicated region
      $region47: #{custom-call.12} parent=5 // pred_check
        _
      $region48: #{custom-call.12} parent=5 // pred_check_branch
        %95 = sbr.rel (%p92) target = $region50
      $region49: #{custom-call.12} parent=5 // pred_region
        #allocation4 [shape = 'f32[3,3]{1,0}', space=vmem, size = 0x1000, scoped, tag = 'rescaled input a']
        %s96 = ssub.s32 %s3, 1
        %s97 = sand.u32 %s8, 1
        %s98 = sand.u32 %s8, 1
        %s99 = smul.addr %s98, 4
        %s100 = scalar_lea.vmem [#allocation1], %s99
        %s101 = sand.u32 %s8, 1
        %s102 = sand.u32 %s8, 1
        %s103 = smul.addr %s102, 4
        %s104 = scalar_lea.vmem [#allocation1], %s103
        %s105 = sand.u32 %s8, 1
        %s106 = sand.u32 %s8, 1
        %s107 = smul.addr %s106, 4
        %s108 = scalar_lea.vmem [#allocation3], %s107
        %s110 = ssub.s32 16, 1
        %v111 = vld [vmem:[%s104] sm:%s110]
        %112 = vst [vmem:[#allocation0] sm:%s110] %v111
        %v113 = vlaneseq
        %v114 = vand.u32 %v113, 127
        %vm115 = vcmp.lt.s32.totalorder %v114, 3
        %v116 = vlaneseq
        %v117 = vshrl.u32 %v116, 7
        %vm119 = vcmp.eq.s32.totalorder %v117, %v114
        %v120 = vld [vmem:[#allocation0] sm:$0xff]
        %v121 = vsel %vm119, %v120, 0.0
        %122 = vadd.xlane.f32.xlu0 %v121
        %v123 = vpop.xlane.xlu0 %122
        %vm124 = vcmp.le.s32.totalorder %v117, %v114
        %vm125 = vmand %vm124, %vm115
        %v126 = vsel %vm125, %v120, 0.0
        %v127 = vrcp.pop %v123
        %v128 = vmul.f32 %v123, %v127
        %v129 = vsub.f32 1.0, %v128
        %v130 = vmul.f32 %v127, %v129
        %v131 = vadd.f32 %v127, %v130
        %vm132 = vweird.f32 %v123
        %vm133 = vweird.f32 %v127
        %vm134 = vmor %vm132, %vm133
        %v135 = vsel %vm134, %v127, %v131
        %v136 = vand.u32 2147483647, %v123
        %vm137 = vcmp.eq.f32.partialorder %v136, 8.507059e+37
        %v138 = vand.u32 %v123, 2147483648
        %v139 = vor.u32 1.1754944e-38, %v138
        %v140 = vsel %vm137, %v139, %v135
        %v141 = vmul.f32 %v126, %v140
        %142 = vst [vmem:[#allocation4] sm:$0xff] %v141
        %v143 = vlaneseq
        %v144 = vand.u32 %v143, 127
        %v145 = vlaneseq
        %v146 = vshrl.u32 %v145, 7
        %vm148 = vcmp.eq.s32.totalorder %v144, %v146
        %v149 = vlaneseq
        %v150 = vand.u32 %v149, 127
        %vm151 = vcmp.eq.s32.totalorder %v150, 2
        %v152 = vsel %vm151, 1.0, -1.0
        %v153 = vsel %vm148, %v152, 0.0
        %s154 = scalar_lea.vmem [#allocation4], 1
        %v155 = vld [vmem:[%s154] ss:$0 sm:$0xff]
        %v156 = vxor.u32 %v155, 2147483648
        %v157 = vlaneseq
        %v158 = vand.u32 %v157, 127
        %vm159 = vcmp.eq.s32.totalorder %v158, 1
        %v160 = vmul.f32 %v156, %v153
        %161 = vadd.xlane.f32.xlu0 %v160
        %v162 = vpop.xlane.xlu0 %161
        %v163 = vsel %vm159, %v162, %v153
        %v164 = vld [vmem:[#allocation4] ss:$0 sm:$0xff]
        %v165 = vxor.u32 %v164, 2147483648
        %v166 = vlaneseq
        %v167 = vand.u32 %v166, 127
        %vm168 = vcmp.eq.s32.totalorder %v167, 0
        %v169 = vmul.f32 %v165, %v163
        %170 = vadd.xlane.f32.xlu0 %v169
        %v171 = vpop.xlane.xlu0 %170
        %v172 = vsel %vm168, %v171, %v163
        %v173 = vrcp.pop %v123
        %v174 = vmul.f32 %v123, %v173
        %v175 = vsub.f32 1.0, %v174
        %v176 = vmul.f32 %v173, %v175
        %v177 = vadd.f32 %v173, %v176
        %vm178 = vweird.f32 %v123
        %vm179 = vweird.f32 %v173
        %vm180 = vmor %vm178, %vm179
        %v181 = vsel %vm180, %v173, %v177
        %v182 = vand.u32 2147483647, %v123
        %vm183 = vcmp.eq.f32.partialorder %v182, 8.507059e+37
        %v184 = vand.u32 %v123, 2147483648
        %v185 = vor.u32 1.1754944e-38, %v184
        %v186 = vsel %vm183, %v185, %v181
        %v187 = vmul.f32 %v172, %v186
        %vm188 = vweird.f32 %v123
        %v189 = vsel %vm188, %v172, %v187
        %190 = vst [vmem:[#allocation2] sm:$0xff] %v189
        %s192 = ssub.s32 16, 1
        %v193 = vld [vmem:[#allocation2] sm:%s192]
        %s195 = ssub.s32 16, 1
        %196 = vst [vmem:[%s108] sm:%s195] %v193
        %s197 = sand.u32 %s8, 1
        %s198 = sand.u32 %s8, 1
        %s199 = smul.addr %s198, 4
        %s200 = scalar_lea.vmem [#allocation3], %s199
        %s201 = sadd.s32 %s17, %s16
        %s202 = sadd.s32 %s201, %s15
        %s203 = sadd.s32 %s202, %s14
        %s204 = smul.addr %s203, 4
        %s205 = scalar_lea.vmem %s1, %s204
        // Predicated region
        $region51: #{custom-call.12} parent=49 // pred_check
          _
        $region52: #{custom-call.12} parent=49 // pred_check_branch
          %207 = sbr.rel (0) target = $region54
        $region53: #{custom-call.12} parent=49 // pred_region
          // Predicated region
          $region55: #{custom-call.12} parent=53 // pred_check
            _
          $region56: #{custom-call.12} parent=53 // pred_check_branch
            %209 = sbr.rel target = $region58
          $region57: #{custom-call.12} parent=53 // pred_region
            // Predicated region
            $region70: #{custom-call.12} parent=57 // pred_check
              _
            $region71: #{custom-call.12} parent=57 // pred_check_branch
              %225 = sbr.rel (0) target = $region73
            $region72: #{custom-call.12} parent=57 // pred_region
              %s227 = ssub.s32 16, 1
              loop: start=0, step=1, limit=1
              $region74: #{custom-call.12} parent=72 // loop_pre_header
                _
              $region75: #{custom-call.12} parent=72 // loop_header
                %s229 = sphi 0, %s233
                %p230 = scmp.ge.s32.totalorder %s229, 1
                %s234 = sphi %s200, %s200
                %s235 = sphi %s205, %s205
              $region76: #{custom-call.12} parent=72 // loop_header_branch
                %232 = sbr.rel (%p230) target = $region80
              $region77: #{custom-call.12} parent=72 // loop_body
                %v236 = vld [vmem:[%s234] sm:%s227]
                %237 = vst [vmem:[%s235] sm:%s227] %v236
              $region78: #{custom-call.12} parent=72 // loop_footer
                %s233 = sadd.s32 1, %s229
              $region79: #{custom-call.12} parent=72 // loop_footer_branch
                %228 = sbr.rel target = $region75
              $region80: #{custom-call.12} parent=72 // loop_exit
                _
            $region73: #{custom-call.12} parent=57 // pred_fallthru
              _
          $region58: #{custom-call.12} parent=53 // pred_fallthru
            _
          // Predicated region
          $region59: #{custom-call.12} parent=53 // pred_check
            _
          $region60: #{custom-call.12} parent=53 // pred_check_branch
            %211 = sbr.rel (0) target = $region62
          $region61: #{custom-call.12} parent=53 // pred_region
            %s213 = ssub.s32 16, 1
            loop: start=0, step=1, limit=1
            $region63: #{custom-call.12} parent=61 // loop_pre_header
              _
            $region64: #{custom-call.12} parent=61 // loop_header
              %s215 = sphi 0, %s219
              %p216 = scmp.ge.s32.totalorder %s215, 1
              %s220 = sphi %s200, %s200
              %s221 = sphi %s205, %s205
            $region65: #{custom-call.12} parent=61 // loop_header_branch
              %218 = sbr.rel (%p216) target = $region69
            $region66: #{custom-call.12} parent=61 // loop_body
              %v222 = vld [vmem:[%s220] sm:%s213]
              %223 = vst [vmem:[%s221] sm:%s213] %v222
            $region67: #{custom-call.12} parent=61 // loop_footer
              %s219 = sadd.s32 1, %s215
            $region68: #{custom-call.12} parent=61 // loop_footer_branch
              %214 = sbr.rel target = $region64
            $region69: #{custom-call.12} parent=61 // loop_exit
              _
          $region62: #{custom-call.12} parent=53 // pred_fallthru
            _
        $region54: #{custom-call.12} parent=49 // pred_fallthru
          _
        %238 = vnop
      $region50: #{custom-call.12} parent=5 // pred_fallthru
        _
      %p239 = scmp.le.s32.totalorder 2, %s3
      // Predicated region
      $region81: #{custom-call.12} parent=5 // pred_check
        %p240 = pneg %p239
      $region82: #{custom-call.12} parent=5 // pred_check_branch
        %242 = sbr.rel (%p240) target = $region84
      $region83: #{custom-call.12} parent=5 // pred_region
        %s243 = ssub.s32 %s3, 2
        %s244 = sand.u32 %s9, 1
        %s245 = sand.u32 %s9, 1
        %s246 = smul.addr %s245, 4
        %s247 = scalar_lea.vmem [#allocation3], %s246
      $region84: #{custom-call.12} parent=5 // pred_fallthru
        _
    $region6: #{custom-call.12} parent=1 // loop_footer
      %s7 = sadd.s32 1, %s3
    $region7: #{custom-call.12} parent=1 // loop_footer_branch
      %2 = sbr.rel target = $region3
    $region8: #{custom-call.12} parent=1 // loop_exit
      _

// kernel: custom-call.13
$region0: #{custom-call.13}
  %s0 = inlined_call_operand.vmem [shape: f32[2,1,3,3], index: 0, kind: input, shape index: {}]
  %s1 = inlined_call_operand.vmem [shape: f32[2,1,3,3], index: 1, kind: output, shape index: {}]
  $region1: #{custom-call.13} parent=0
    #allocation0 [shape = 'u8[4096]{0}', space=vmem, size = 0x1000, scoped, tag = 'operand span for operand 0']
    #allocation1 [shape = 'u8[4096]{0}', space=vmem, size = 0x1000, scoped, tag = 'packed  for operand 0']
    #allocation2 [shape = 'u8[4096]{0}', space=vmem, size = 0x1000, scoped, tag = 'operand span for operand 1']
    #allocation3 [shape = 'u8[4096]{0}', space=vmem, size = 0x1000, scoped, tag = 'packed  for operand 1']
    loop: start=0, step=1, limit=4
    $region2: #{custom-call.13} parent=1 // loop_pre_header
      _
    $region3: #{custom-call.13} parent=1 // loop_header
      %s3 = sphi 0, %s7
      %p4 = scmp.ge.s32.totalorder %s3, 4
      %s10 = sphi 0, %s36
      %s11 = sphi 0, %s32
      %s12 = sphi 0, %s28
      %s13 = sphi 0, %s24
      %s14 = sphi 0, %s10
      %s15 = sphi 0, %s11
      %s16 = sphi 0, %s12
      %s17 = sphi 0, %s13
      %s18 = sphi 0, %s14
      %s19 = sphi 0, %s15
      %s20 = sphi 0, %s16
      %s21 = sphi 0, %s17
    $region4: #{custom-call.13} parent=1 // loop_header_branch
      %6 = sbr.rel (%p4) target = $region8
    $region5: #{custom-call.13} parent=1 // loop_body
      %s8 = ssub.s32 %s3, 1
      %s9 = ssub.s32 %s3, 2
      %s22 = sadd.s32 1, %s13
      %p23 = scmp.ge.s32.totalorder %s22, 1
      %s24 = scalar_select %p23, 0, %s22
      %s25 = sadd.s32 1, %s12
      %s26 = scalar_select %p23, %s25, %s12
      %p27 = scmp.ge.s32.totalorder %s26, 1
      %s28 = scalar_select %p27, 0, %s26
      %s29 = sadd.s32 1, %s11
      %s30 = scalar_select %p27, %s29, %s11
      %p31 = scmp.ge.s32.totalorder %s30, 1
      %s32 = scalar_select %p31, 0, %s30
      %s33 = sadd.s32 1, %s10
      %s34 = scalar_select %p31, %s33, %s10
      %p35 = scmp.ge.s32.totalorder %s34, 2
      %s36 = scalar_select %p35, 0, %s34
      %p37 = scmp.le.s32.totalorder 1, %s3
      %p38 = scmp.lt.s32.totalorder %s3, 3
      %p39 = pnand %p37, %p38
      %p40 = pneg %p39
      // Predicated region
      $region9: #{custom-call.13} parent=5 // pred_check
        _
      $region10: #{custom-call.13} parent=5 // pred_check_branch
        %42 = sbr.rel (%p39) target = $region12
      $region11: #{custom-call.13} parent=5 // pred_region
        %s43 = ssub.s32 %s3, 1
      $region12: #{custom-call.13} parent=5 // pred_fallthru
        _
      %p44 = scmp.lt.s32.totalorder %s3, 2
      // Predicated region
      $region13: #{custom-call.13} parent=5 // pred_check
        %p45 = pneg %p44
      $region14: #{custom-call.13} parent=5 // pred_check_branch
        %47 = sbr.rel (%p45) target = $region16
      $region15: #{custom-call.13} parent=5 // pred_region
        %s48 = sand.u32 %s3, 1
        %s49 = sand.u32 %s3, 1
        %s50 = smul.addr %s49, 4
        %s51 = scalar_lea.vmem [#allocation1], %s50
        %s52 = sadd.s32 %s13, %s12
        %s53 = sadd.s32 %s52, %s11
        %s54 = sadd.s32 %s53, %s10
        %s55 = smul.addr %s54, 4
        %s56 = scalar_lea.vmem %s0, %s55
        // Predicated region
        $region17: #{custom-call.13} parent=15 // pred_check
          _
        $region18: #{custom-call.13} parent=15 // pred_check_branch
          %58 = sbr.rel (0) target = $region20
        $region19: #{custom-call.13} parent=15 // pred_region
          // Predicated region
          $region21: #{custom-call.13} parent=19 // pred_check
            _
          $region22: #{custom-call.13} parent=19 // pred_check_branch
            %60 = sbr.rel target = $region24
          $region23: #{custom-call.13} parent=19 // pred_region
            // Predicated region
            $region36: #{custom-call.13} parent=23 // pred_check
              _
            $region37: #{custom-call.13} parent=23 // pred_check_branch
              %76 = sbr.rel (0) target = $region39
            $region38: #{custom-call.13} parent=23 // pred_region
              %s78 = ssub.s32 16, 1
              loop: start=0, step=1, limit=1
              $region40: #{custom-call.13} parent=38 // loop_pre_header
                _
              $region41: #{custom-call.13} parent=38 // loop_header
                %s80 = sphi 0, %s84
                %p81 = scmp.ge.s32.totalorder %s80, 1
                %s85 = sphi %s56, %s56
                %s86 = sphi %s51, %s51
              $region42: #{custom-call.13} parent=38 // loop_header_branch
                %83 = sbr.rel (%p81) target = $region46
              $region43: #{custom-call.13} parent=38 // loop_body
                %v87 = vld [vmem:[%s85] sm:%s78]
                %88 = vst [vmem:[%s86] sm:%s78] %v87
              $region44: #{custom-call.13} parent=38 // loop_footer
                %s84 = sadd.s32 1, %s80
              $region45: #{custom-call.13} parent=38 // loop_footer_branch
                %79 = sbr.rel target = $region41
              $region46: #{custom-call.13} parent=38 // loop_exit
                _
            $region39: #{custom-call.13} parent=23 // pred_fallthru
              _
          $region24: #{custom-call.13} parent=19 // pred_fallthru
            _
          // Predicated region
          $region25: #{custom-call.13} parent=19 // pred_check
            _
          $region26: #{custom-call.13} parent=19 // pred_check_branch
            %62 = sbr.rel (0) target = $region28
          $region27: #{custom-call.13} parent=19 // pred_region
            %s64 = ssub.s32 16, 1
            loop: start=0, step=1, limit=1
            $region29: #{custom-call.13} parent=27 // loop_pre_header
              _
            $region30: #{custom-call.13} parent=27 // loop_header
              %s66 = sphi 0, %s70
              %p67 = scmp.ge.s32.totalorder %s66, 1
              %s71 = sphi %s56, %s56
              %s72 = sphi %s51, %s51
            $region31: #{custom-call.13} parent=27 // loop_header_branch
              %69 = sbr.rel (%p67) target = $region35
            $region32: #{custom-call.13} parent=27 // loop_body
              %v73 = vld [vmem:[%s71] sm:%s64]
              %74 = vst [vmem:[%s72] sm:%s64] %v73
            $region33: #{custom-call.13} parent=27 // loop_footer
              %s70 = sadd.s32 1, %s66
            $region34: #{custom-call.13} parent=27 // loop_footer_branch
              %65 = sbr.rel target = $region30
            $region35: #{custom-call.13} parent=27 // loop_exit
              _
          $region28: #{custom-call.13} parent=19 // pred_fallthru
            _
        $region20: #{custom-call.13} parent=15 // pred_fallthru
          _
        %89 = vnop
      $region16: #{custom-call.13} parent=5 // pred_fallthru
        _
      %p90 = scmp.le.s32.totalorder 1, %s3
      %p91 = scmp.lt.s32.totalorder %s3, 3
      %p92 = pnand %p90, %p91
      %p93 = pneg %p92
      // Predicated region
      $region47: #{custom-call.13} parent=5 // pred_check
        _
      $region48: #{custom-call.13} parent=5 // pred_check_branch
        %95 = sbr.rel (%p92) target = $region50
      $region49: #{custom-call.13} parent=5 // pred_region
        #allocation4 [shape = 'f32[3,3]{1,0}', space=vmem, size = 0x1000, scoped, tag = 'rescaled input a']
        %s96 = ssub.s32 %s3, 1
        %s97 = sand.u32 %s8, 1
        %s98 = sand.u32 %s8, 1
        %s99 = smul.addr %s98, 4
        %s100 = scalar_lea.vmem [#allocation1], %s99
        %s101 = sand.u32 %s8, 1
        %s102 = sand.u32 %s8, 1
        %s103 = smul.addr %s102, 4
        %s104 = scalar_lea.vmem [#allocation1], %s103
        %s105 = sand.u32 %s8, 1
        %s106 = sand.u32 %s8, 1
        %s107 = smul.addr %s106, 4
        %s108 = scalar_lea.vmem [#allocation3], %s107
        %s110 = ssub.s32 16, 1
        %v111 = vld [vmem:[%s104] sm:%s110]
        %112 = vst [vmem:[#allocation0] sm:%s110] %v111
        %v113 = vlaneseq
        %v114 = vand.u32 %v113, 127
        %vm115 = vcmp.lt.s32.totalorder %v114, 3
        %v116 = vlaneseq
        %v117 = vshrl.u32 %v116, 7
        %vm119 = vcmp.eq.s32.totalorder %v117, %v114
        %v120 = vld [vmem:[#allocation0] sm:$0xff]
        %v121 = vsel %vm119, %v120, 0.0
        %122 = vadd.xlane.f32.xlu0 %v121
        %v123 = vpop.xlane.xlu0 %122
        %vm124 = vcmp.ge.s32.totalorder %v117, %v114
        %vm125 = vmand %vm124, %vm115
        %v126 = vsel %vm125, %v120, 0.0
        %v127 = vrcp.pop %v123
        %v128 = vmul.f32 %v123, %v127
        %v129 = vsub.f32 1.0, %v128
        %v130 = vmul.f32 %v127, %v129
        %v131 = vadd.f32 %v127, %v130
        %vm132 = vweird.f32 %v123
        %vm133 = vweird.f32 %v127
        %vm134 = vmor %vm132, %vm133
        %v135 = vsel %vm134, %v127, %v131
        %v136 = vand.u32 2147483647, %v123
        %vm137 = vcmp.eq.f32.partialorder %v136, 8.507059e+37
        %v138 = vand.u32 %v123, 2147483648
        %v139 = vor.u32 1.1754944e-38, %v138
        %v140 = vsel %vm137, %v139, %v135
        %v141 = vmul.f32 %v126, %v140
        %142 = vst [vmem:[#allocation4] sm:$0xff] %v141
        %v143 = vlaneseq
        %v144 = vand.u32 %v143, 127
        %v145 = vlaneseq
        %v146 = vshrl.u32 %v145, 7
        %vm148 = vcmp.eq.s32.totalorder %v144, %v146
        %v149 = vlaneseq
        %v150 = vand.u32 %v149, 127
        %vm151 = vcmp.eq.s32.totalorder %v150, 0
        %v152 = vsel %vm151, 1.0, -1.0
        %v153 = vsel %vm148, %v152, 0.0
        %s154 = scalar_lea.vmem [#allocation4], 1
        %v155 = vld [vmem:[%s154] ss:$0 sm:$0xff]
        %v156 = vxor.u32 %v155, 2147483648
        %v157 = vlaneseq
        %v158 = vand.u32 %v157, 127
        %vm159 = vcmp.eq.s32.totalorder %v158, 1
        %v160 = vmul.f32 %v156, %v153
        %161 = vadd.xlane.f32.xlu0 %v160
        %v162 = vpop.xlane.xlu0 %161
        %v163 = vsel %vm159, %v162, %v153
        %s164 = scalar_lea.vmem [#allocation4], 2
        %v165 = vld [vmem:[%s164] ss:$0 sm:$0xff]
        %v166 = vxor.u32 %v165, 2147483648
        %v167 = vlaneseq
        %v168 = vand.u32 %v167, 127
        %vm169 = vcmp.eq.s32.totalorder %v168, 2
        %v170 = vmul.f32 %v166, %v163
        %171 = vadd.xlane.f32.xlu0 %v170
        %v172 = vpop.xlane.xlu0 %171
        %v173 = vsel %vm169, %v172, %v163
        %v174 = vrcp.pop %v123
        %v175 = vmul.f32 %v123, %v174
        %v176 = vsub.f32 1.0, %v175
        %v177 = vmul.f32 %v174, %v176
        %v178 = vadd.f32 %v174, %v177
        %vm179 = vweird.f32 %v123
        %vm180 = vweird.f32 %v174
        %vm181 = vmor %vm179, %vm180
        %v182 = vsel %vm181, %v174, %v178
        %v183 = vand.u32 2147483647, %v123
        %vm184 = vcmp.eq.f32.partialorder %v183, 8.507059e+37
        %v185 = vand.u32 %v123, 2147483648
        %v186 = vor.u32 1.1754944e-38, %v185
        %v187 = vsel %vm184, %v186, %v182
        %v188 = vmul.f32 %v173, %v187
        %vm189 = vweird.f32 %v123
        %v190 = vsel %vm189, %v173, %v188
        %191 = vst [vmem:[#allocation2] sm:$0xff] %v190
        %s193 = ssub.s32 16, 1
        %v194 = vld [vmem:[#allocation2] sm:%s193]
        %s196 = ssub.s32 16, 1
        %197 = vst [vmem:[%s108] sm:%s196] %v194
        %s198 = sand.u32 %s8, 1
        %s199 = sand.u32 %s8, 1
        %s200 = smul.addr %s199, 4
        %s201 = scalar_lea.vmem [#allocation3], %s200
        %s202 = sadd.s32 %s17, %s16
        %s203 = sadd.s32 %s202, %s15
        %s204 = sadd.s32 %s203, %s14
        %s205 = smul.addr %s204, 4
        %s206 = scalar_lea.vmem %s1, %s205
        // Predicated region
        $region51: #{custom-call.13} parent=49 // pred_check
          _
        $region52: #{custom-call.13} parent=49 // pred_check_branch
          %208 = sbr.rel (0) target = $region54
        $region53: #{custom-call.13} parent=49 // pred_region
          // Predicated region
          $region55: #{custom-call.13} parent=53 // pred_check
            _
          $region56: #{custom-call.13} parent=53 // pred_check_branch
            %210 = sbr.rel target = $region58
          $region57: #{custom-call.13} parent=53 // pred_region
            // Predicated region
            $region70: #{custom-call.13} parent=57 // pred_check
              _
            $region71: #{custom-call.13} parent=57 // pred_check_branch
              %226 = sbr.rel (0) target = $region73
            $region72: #{custom-call.13} parent=57 // pred_region
              %s228 = ssub.s32 16, 1
              loop: start=0, step=1, limit=1
              $region74: #{custom-call.13} parent=72 // loop_pre_header
                _
              $region75: #{custom-call.13} parent=72 // loop_header
                %s230 = sphi 0, %s234
                %p231 = scmp.ge.s32.totalorder %s230, 1
                %s235 = sphi %s201, %s201
                %s236 = sphi %s206, %s206
              $region76: #{custom-call.13} parent=72 // loop_header_branch
                %233 = sbr.rel (%p231) target = $region80
              $region77: #{custom-call.13} parent=72 // loop_body
                %v237 = vld [vmem:[%s235] sm:%s228]
                %238 = vst [vmem:[%s236] sm:%s228] %v237
              $region78: #{custom-call.13} parent=72 // loop_footer
                %s234 = sadd.s32 1, %s230
              $region79: #{custom-call.13} parent=72 // loop_footer_branch
                %229 = sbr.rel target = $region75
              $region80: #{custom-call.13} parent=72 // loop_exit
                _
            $region73: #{custom-call.13} parent=57 // pred_fallthru
              _
          $region58: #{custom-call.13} parent=53 // pred_fallthru
            _
          // Predicated region
          $region59: #{custom-call.13} parent=53 // pred_check
            _
          $region60: #{custom-call.13} parent=53 // pred_check_branch
            %212 = sbr.rel (0) target = $region62
          $region61: #{custom-call.13} parent=53 // pred_region
            %s214 = ssub.s32 16, 1
            loop: start=0, step=1, limit=1
            $region63: #{custom-call.13} parent=61 // loop_pre_header
              _
            $region64: #{custom-call.13} parent=61 // loop_header
              %s216 = sphi 0, %s220
              %p217 = scmp.ge.s32.totalorder %s216, 1
              %s221 = sphi %s201, %s201
              %s222 = sphi %s206, %s206
            $region65: #{custom-call.13} parent=61 // loop_header_branch
              %219 = sbr.rel (%p217) target = $region69
            $region66: #{custom-call.13} parent=61 // loop_body
              %v223 = vld [vmem:[%s221] sm:%s214]
              %224 = vst [vmem:[%s222] sm:%s214] %v223
            $region67: #{custom-call.13} parent=61 // loop_footer
              %s220 = sadd.s32 1, %s216
            $region68: #{custom-call.13} parent=61 // loop_footer_branch
              %215 = sbr.rel target = $region64
            $region69: #{custom-call.13} parent=61 // loop_exit
              _
          $region62: #{custom-call.13} parent=53 // pred_fallthru
            _
        $region54: #{custom-call.13} parent=49 // pred_fallthru
          _
        %239 = vnop
      $region50: #{custom-call.13} parent=5 // pred_fallthru
        _
      %p240 = scmp.le.s32.totalorder 2, %s3
      // Predicated region
      $region81: #{custom-call.13} parent=5 // pred_check
        %p241 = pneg %p240
      $region82: #{custom-call.13} parent=5 // pred_check_branch
        %243 = sbr.rel (%p241) target = $region84
      $region83: #{custom-call.13} parent=5 // pred_region
        %s244 = ssub.s32 %s3, 2
        %s245 = sand.u32 %s9, 1
        %s246 = sand.u32 %s9, 1
        %s247 = smul.addr %s246, 4
        %s248 = scalar_lea.vmem [#allocation3], %s247
      $region84: #{custom-call.13} parent=5 // pred_fallthru
        _
    $region6: #{custom-call.13} parent=1 // loop_footer
      %s7 = sadd.s32 1, %s3
    $region7: #{custom-call.13} parent=1 // loop_footer_branch
      %2 = sbr.rel target = $region3
    $region8: #{custom-call.13} parent=1 // loop_exit
      _

// kernel: post_process_pose.1
$region0: #{post_process_pose.1}
  #allocation0 [shape = 'u32[]', space=smem, size = 0x4, offset = 0x4, fixed_abs, tag = 'smem constant byte address 0x4 - core index']
  #allocation1 [shape = 'u32[72,128]{1,0:T(1,128)}', space=vmem, size = 0x9000, scoped, tag = 'internal scratch']
  %s0 = inlined_call_operand.vmem [shape: f32[8,128], index: 0, kind: input, shape index: {}]
  %s1 = inlined_call_operand.vmem [shape: f32[4,8,128], index: 1, kind: input, shape index: {}]
  %s2 = inlined_call_operand.vmem [shape: f32[3,8,128], index: 2, kind: input, shape index: {}]
  %s3 = inlined_call_operand.vmem [shape: f32[9,8,128], index: 3, kind: output, shape index: {0}]
  %s4 = inlined_call_operand.vmem [shape: f32[3,8,128], index: 4, kind: output, shape index: {1}]
  %5 = xla_tuple %s3, %s4
  %s6 = sld [smem:[#allocation0]]
  $region30: #{post_process_pose.1} parent=0
    _
  %s8 = ssub.s32 1, %s6
  %s9 = scalar_select 0, %s8, %s6
  // Predicated region
  $region2: #{post_process_pose.1} parent=0 // pred_check
    _
  $region3: #{post_process_pose.1} parent=0 // pred_check_branch
    %11 = sbr.rel (0) target = $region5
  $region4: #{post_process_pose.1} parent=0 // pred_region
    _
  $region5: #{post_process_pose.1} parent=0 // pred_fallthru
    _
  // Predicated region
  $region6: #{post_process_pose.1} parent=0 // pred_check
    _
  $region7: #{post_process_pose.1} parent=0 // pred_check_branch
    %13 = sbr.rel (0) target = $region9
  $region8: #{post_process_pose.1} parent=0 // pred_region
    _
  $region9: #{post_process_pose.1} parent=0 // pred_fallthru
    _
  // Predicated region
  $region10: #{post_process_pose.1} parent=0 // pred_check
    _
  $region11: #{post_process_pose.1} parent=0 // pred_check_branch
    %15 = sbr.rel (0) target = $region13
  $region12: #{post_process_pose.1} parent=0 // pred_region
    _
  $region13: #{post_process_pose.1} parent=0 // pred_fallthru
    _
  %v16 = vld [vmem:[%s1] sm:$0xff]
  %s17 = scalar_lea.vmem %s1, 8
  %v18 = vld [vmem:[%s17] sm:$0xff]
  %s19 = scalar_lea.vmem %s1, 16
  %v20 = vld [vmem:[%s19] sm:$0xff]
  %s21 = scalar_lea.vmem %s1, 24
  %v22 = vld [vmem:[%s21] sm:$0xff]
  %v23 = vmul.f32 %v16, %v16
  %v24 = vmul.f32 %v18, %v18
  %v25 = vadd.f32 %v23, %v24
  %v26 = vmul.f32 %v20, %v20
  %v27 = vadd.f32 %v25, %v26
  %v28 = vmul.f32 %v22, %v22
  %v29 = vadd.f32 %v27, %v28
  %v30 = vadd.f32 %v29, 1e-24
  %v31 = vrsqrt.pop %v30
  %v32 = vmul.f32 %v31, %v30
  %v33 = vmul.f32 %v32, %v31
  %v34 = vmul.f32 0.5, %v33
  %v35 = vsub.f32 1.5, %v34
  %v36 = vmul.f32 %v31, %v35
  %vm37 = vweird.f32 %v30
  %vm38 = vweird.f32 %v31
  %vm39 = vmor %vm37, %vm38
  %v40 = vsel %vm39, %v31, %v36
  %v41 = vmul.f32 %v16, %v40
  %v42 = vmul.f32 %v18, %v40
  %v43 = vmul.f32 %v20, %v40
  %v44 = vmul.f32 %v22, %v40
  %v45 = vadd.f32 %v42, %v42
  %v46 = vadd.f32 %v43, %v43
  %v47 = vadd.f32 %v44, %v44
  %v48 = vmul.f32 %v42, %v45
  %v49 = vmul.f32 %v43, %v46
  %v50 = vmul.f32 %v44, %v47
  %v51 = vmul.f32 %v41, %v45
  %v52 = vmul.f32 %v41, %v46
  %v53 = vmul.f32 %v41, %v47
  %v54 = vmul.f32 %v42, %v46
  %v55 = vmul.f32 %v42, %v47
  %v56 = vmul.f32 %v43, %v47
  %v57 = vadd.f32 %v49, %v50
  %v58 = vsub.f32 1.0, %v57
  %v59 = vsub.f32 %v54, %v53
  %v60 = vadd.f32 %v55, %v52
  %v61 = vadd.f32 %v54, %v53
  %v62 = vadd.f32 %v48, %v50
  %v63 = vsub.f32 1.0, %v62
  %v64 = vsub.f32 %v56, %v51
  %v65 = vsub.f32 %v55, %v52
  %v66 = vadd.f32 %v56, %v51
  %v67 = vadd.f32 %v48, %v49
  %v68 = vsub.f32 1.0, %v67
  %v69 = vld [vmem:[%s2] sm:$0xff]
  %s70 = scalar_lea.vmem %s2, 8
  %v71 = vld [vmem:[%s70] sm:$0xff]
  %s72 = scalar_lea.vmem %s2, 16
  %v73 = vld [vmem:[%s72] sm:$0xff]
  %v74 = vld [vmem:[%s0] sm:$0xff]
  %76 = vset.pattern.permute.xlu0 0
  %77 = vperm.xlu0 %76, %v74
  %v78 = vpop.permute.xlu0 %77
  %v80 = vmul.f32 %v78, %v58
  %81 = vset.pattern.permute.xlu0 1
  %82 = vperm.xlu0 %81, %v74
  %v83 = vpop.permute.xlu0 %82
  %v85 = vmul.f32 %v83, %v61
  %v86 = vadd.f32 %v80, %v85
  %87 = vset.pattern.permute.xlu0 2
  %88 = vperm.xlu0 %87, %v74
  %v89 = vpop.permute.xlu0 %88
  %v91 = vmul.f32 %v89, %v65
  %v92 = vadd.f32 %v86, %v91
  %93 = vst [vmem:[%s3] sm:$0xff] %v92
  %v94 = vmul.f32 %v78, %v59
  %v95 = vmul.f32 %v83, %v63
  %v96 = vadd.f32 %v94, %v95
  %v97 = vmul.f32 %v89, %v66
  %v98 = vadd.f32 %v96, %v97
  %s99 = scalar_lea.vmem %s3, 8
  %100 = vst [vmem:[%s99] sm:$0xff] %v98
  %v101 = vmul.f32 %v78, %v60
  %v102 = vmul.f32 %v83, %v64
  %v103 = vadd.f32 %v101, %v102
  %v104 = vmul.f32 %v89, %v68
  %v105 = vadd.f32 %v103, %v104
  %s106 = scalar_lea.vmem %s3, 16
  %107 = vst [vmem:[%s106] sm:$0xff] %v105
  %108 = vset.pattern.permute.xlu0 9
  %109 = vperm.xlu0 %108, %v74
  %v110 = vpop.permute.xlu0 %109
  %v112 = vmul.f32 %v110, %v69
  %113 = vset.pattern.permute.xlu0 10
  %114 = vperm.xlu0 %113, %v74
  %v115 = vpop.permute.xlu0 %114
  %v117 = vmul.f32 %v115, %v71
  %v118 = vadd.f32 %v112, %v117
  %119 = vset.pattern.permute.xlu0 11
  %120 = vperm.xlu0 %119, %v74
  %v121 = vpop.permute.xlu0 %120
  %v123 = vmul.f32 %v121, %v73
  %v124 = vadd.f32 %v118, %v123
  %125 = vst [vmem:[%s4] sm:$0xff] %v124
  %126 = vset.pattern.permute.xlu0 3
  %127 = vperm.xlu0 %126, %v74
  %v128 = vpop.permute.xlu0 %127
  %v130 = vmul.f32 %v128, %v58
  %131 = vset.pattern.permute.xlu0 4
  %132 = vperm.xlu0 %131, %v74
  %v133 = vpop.permute.xlu0 %132
  %v135 = vmul.f32 %v133, %v61
  %v136 = vadd.f32 %v130, %v135
  %137 = vset.pattern.permute.xlu0 5
  %138 = vperm.xlu0 %137, %v74
  %v139 = vpop.permute.xlu0 %138
  %v141 = vmul.f32 %v139, %v65
  %v142 = vadd.f32 %v136, %v141
  %s143 = scalar_lea.vmem %s3, 24
  %144 = vst [vmem:[%s143] sm:$0xff] %v142
  %v145 = vmul.f32 %v128, %v59
  %v146 = vmul.f32 %v133, %v63
  %v147 = vadd.f32 %v145, %v146
  %v148 = vmul.f32 %v139, %v66
  %v149 = vadd.f32 %v147, %v148
  %s150 = scalar_lea.vmem %s3, 32
  %151 = vst [vmem:[%s150] sm:$0xff] %v149
  %v152 = vmul.f32 %v128, %v60
  %v153 = vmul.f32 %v133, %v64
  %v154 = vadd.f32 %v152, %v153
  %v155 = vmul.f32 %v139, %v68
  %v156 = vadd.f32 %v154, %v155
  %s157 = scalar_lea.vmem %s3, 40
  %158 = vst [vmem:[%s157] sm:$0xff] %v156
  %159 = vset.pattern.permute.xlu0 12
  %160 = vperm.xlu0 %159, %v74
  %v161 = vpop.permute.xlu0 %160
  %v163 = vmul.f32 %v161, %v69
  %164 = vset.pattern.permute.xlu0 13
  %165 = vperm.xlu0 %164, %v74
  %v166 = vpop.permute.xlu0 %165
  %v168 = vmul.f32 %v166, %v71
  %v169 = vadd.f32 %v163, %v168
  %170 = vset.pattern.permute.xlu0 14
  %171 = vperm.xlu0 %170, %v74
  %v172 = vpop.permute.xlu0 %171
  %v174 = vmul.f32 %v172, %v73
  %v175 = vadd.f32 %v169, %v174
  %s176 = scalar_lea.vmem %s4, 8
  %177 = vst [vmem:[%s176] sm:$0xff] %v175
  %178 = vset.pattern.permute.xlu0 6
  %179 = vperm.xlu0 %178, %v74
  %v180 = vpop.permute.xlu0 %179
  %v182 = vmul.f32 %v180, %v58
  %183 = vset.pattern.permute.xlu0 7
  %184 = vperm.xlu0 %183, %v74
  %v185 = vpop.permute.xlu0 %184
  %v187 = vmul.f32 %v185, %v61
  %v188 = vadd.f32 %v182, %v187
  %189 = vset.pattern.permute.xlu0 8
  %190 = vperm.xlu0 %189, %v74
  %v191 = vpop.permute.xlu0 %190
  %v193 = vmul.f32 %v191, %v65
  %v194 = vadd.f32 %v188, %v193
  %s195 = scalar_lea.vmem %s3, 48
  %196 = vst [vmem:[%s195] sm:$0xff] %v194
  %v197 = vmul.f32 %v180, %v59
  %v198 = vmul.f32 %v185, %v63
  %v199 = vadd.f32 %v197, %v198
  %v200 = vmul.f32 %v191, %v66
  %v201 = vadd.f32 %v199, %v200
  %s202 = scalar_lea.vmem %s3, 56
  %203 = vst [vmem:[%s202] sm:$0xff] %v201
  %v204 = vmul.f32 %v180, %v60
  %v205 = vmul.f32 %v185, %v64
  %v206 = vadd.f32 %v204, %v205
  %v207 = vmul.f32 %v191, %v68
  %v208 = vadd.f32 %v206, %v207
  %s209 = scalar_lea.vmem %s3, 64
  %210 = vst [vmem:[%s209] sm:$0xff] %v208
  %211 = vset.pattern.permute.xlu0 15
  %212 = vperm.xlu0 %211, %v74
  %v213 = vpop.permute.xlu0 %212
  %v215 = vmul.f32 %v213, %v69
  %216 = vset.pattern.permute.xlu0 16
  %217 = vperm.xlu0 %216, %v74
  %v218 = vpop.permute.xlu0 %217
  %v220 = vmul.f32 %v218, %v71
  %v221 = vadd.f32 %v215, %v220
  %222 = vset.pattern.permute.xlu0 17
  %223 = vperm.xlu0 %222, %v74
  %v224 = vpop.permute.xlu0 %223
  %v226 = vmul.f32 %v224, %v73
  %v227 = vadd.f32 %v221, %v226
  %s228 = scalar_lea.vmem %s4, 16
  %229 = vst [vmem:[%s228] sm:$0xff] %v227
  // Predicated region
  $region14: #{post_process_pose.1} parent=0 // pred_check
    _
  $region15: #{post_process_pose.1} parent=0 // pred_check_branch
    %231 = sbr.rel (0) target = $region17
  $region16: #{post_process_pose.1} parent=0 // pred_region
    _
  $region17: #{post_process_pose.1} parent=0 // pred_fallthru
    _
  // Predicated region
  $region18: #{post_process_pose.1} parent=0 // pred_check
    _
  $region19: #{post_process_pose.1} parent=0 // pred_check_branch
    %233 = sbr.rel (0) target = $region21
  $region20: #{post_process_pose.1} parent=0 // pred_region
    _
  $region21: #{post_process_pose.1} parent=0 // pred_fallthru
    _
  // Predicated region
  $region22: #{post_process_pose.1} parent=0 // pred_check
    _
  $region23: #{post_process_pose.1} parent=0 // pred_check_branch
    %235 = sbr.rel (0) target = $region25
  $region24: #{post_process_pose.1} parent=0 // pred_region
    _
  $region25: #{post_process_pose.1} parent=0 // pred_fallthru
    _
  // Predicated region
  $region26: #{post_process_pose.1} parent=0 // pred_check
    _
  $region27: #{post_process_pose.1} parent=0 // pred_check_branch
    %237 = sbr.rel (0) target = $region29
  $region28: #{post_process_pose.1} parent=0 // pred_region
    _
  $region29: #{post_process_pose.1} parent=0 // pred_fallthru
    _

</llo_original>
